<compile_context>
chip_gen: v6e
topology: v6e:2x2x1
jax: 0.10.0
libtpu: 0.0.40
codegen_flags: <defaults>
</compile_context>

<pallas_src>
import math

import jax
import jax.numpy as jnp
from jax.experimental import pallas as pl
from jax.experimental.pallas import tpu as pltpu

EPS = 1e-10        # torchdrug RelationalGraphConv.eps
LANE = 128


def _swish(x):
    return x * jax.nn.sigmoid(x)


def _rup(x, m=LANE):
    return ((x + m - 1) // m) * m


def _pad2(x, rows, cols):
    return jnp.pad(x, ((0, rows - x.shape[0]), (0, cols - x.shape[1])))


def _mm_flops(m, k, n):
    return 2 * m * k * n


def _nbytes(*arrs):
    return int(sum(int(a.size) * a.dtype.itemsize for a in arrs))


def _tpu_settings():
    """(dst-row tile target for kernel2, row tile target for kernel1, vmem cap)."""
    kind = ""
    try:
        kind = jax.devices()[0].device_kind.lower()
    except Exception:
        pass
    if ("v5" in kind) or ("v6" in kind):
        # 128 MiB VMEM: big row tiles amortize the ~0.35us per-grid-step
        # overhead on these mem-bound kernels.
        return 256, 1024, 100 * 1024 * 1024
    # v7x (64 MiB per TC) and unknown generations: conservative.
    return 128, 512, 48 * 1024 * 1024


# ----------------------------------------------------------------------------
# Kernel 1: per-node features (lin_1/lin_2 fused, lin_feature0/1 fused mids)
# Row-tiled, purely pointwise per node -> "parallel" grid axis.
# Emits src0||src1 as one lane-dense (T, 2*h_pad) bf16 slab + x_lin_2 in bf16.
# ----------------------------------------------------------------------------
def make_feature_kernel(h_pad, m_pad):
    def kernel(mono_ref, atom_ref, w12, b12, fm, f1at, f0b, f1b,
               src_ref, x2_ref):
        def dot(a, b_):
            return jnp.dot(a, b_, preferred_element_type=jnp.float32)

        bf = jnp.bfloat16
        x = mono_ref[...]                                   # bf16 (T, Dp)
        af = atom_ref[...]                                  # bf16 (T, Ap)

        # lin_1 | lin_2 fused into one 2*h-wide dot
        x12 = _swish(dot(x, w12[...]) + b12[...])           # f32 (T, 2Hp)
        x1 = x12[:, :h_pad].astype(bf)
        x2 = x12[:, h_pad:]

        # lin_feature0.lin1 | lin_feature1.lin1(x-part) fused (both consume x1)
        mid = dot(x1, fm[...])                              # f32 (T, 2Mp)
        mid0 = mid[:, :m_pad].astype(bf)
        mid1 = (mid[:, m_pad:] + dot(af, f1at[...])).astype(bf)

        if0 = dot(mid0, f0b[...])                           # f32 (T, Hp)
        if1 = dot(mid1, f1b[...])

        src_ref[...] = jnp.concatenate([if0, if1], axis=-1).astype(bf)
        x2_ref[...] = x2.astype(bf)
    return kernel


# ----------------------------------------------------------------------------
# Kernel 2: relational graph convs (fused conv0/conv1 source stream) + head.
# Grid over dst-node row tiles; raw int8 adjacency streamed as (R, T, Np)
# slabs and converted to bf16 in-kernel; degree normalization applied in f32
# to the post-dot aggregate.
# ----------------------------------------------------------------------------
def make_mp_kernel(num_relation, num_layers, tile_n, h_pad):
    R = num_relation

    def kernel(adj_ref, invdeg_ref, src_ref, x2_ref, *rest):
        out_ref = rest[-1]
        it = iter(rest[:-1])
        nx = lambda: next(it)[...]

        def dot(a, b_):
            return jnp.dot(a, b_, preferred_element_type=jnp.float32)

        def bf(x):
            return x.astype(jnp.bfloat16)

        i0 = pl.multiple_of(pl.program_id(0) * tile_n, tile_n)
        src = src_ref[...]                          # bf16 (Np, 2Hp)  src0||src1
        dst = src_ref[pl.ds(i0, tile_n), :]         # bf16 (T, 2Hp)   own rows
        invdeg = invdeg_ref[...]                    # f32  (T, R)

        # Fused relational aggregation: one 2*Hp-wide dot per relation feeds
        # both conv0 and conv1; normalize the small aggregate in f32.
        aggs = []
        for r in range(R):
            a_r = bf(adj_ref[r])                    # int8 0/1 -> bf16 (T, Np)
            agg = dot(a_r, src) * invdeg[:, r:r + 1]
            aggs.append(bf(agg))
        agg0 = jnp.concatenate([a[:, :h_pad] for a in aggs], axis=-1)  # (T, R*Hp)
        agg1 = jnp.concatenate([a[:, h_pad:] for a in aggs], axis=-1)
        dst0, dst1 = dst[:, :h_pad], dst[:, h_pad:]

        # conv0 -> lin0 -> swish   (dropout p=0 is identity)
        ws, bsr, wr = nx(), nx(), nx()
        h0 = jax.nn.relu(dot(dst0, ws) + bsr + dot(agg0, wr))
        w_, b_ = nx(), nx()
        h0 = bf(_swish(dot(bf(h0), w_) + b_))
        # conv1 -> lin1 -> swish
        ws, bsr, wr = nx(), nx(), nx()
        h1 = jax.nn.relu(dot(dst1, ws) + bsr + dot(agg1, wr))
        w_, b_ = nx(), nx()
        h1 = bf(_swish(dot(bf(h1), w_) + b_))

        # lins_cat[0] on concat(h0, h1): split weight rows (no concat)
        wa, wb, bc = nx(), nx(), nx()
        h = bf(_swish(dot(h0, wa) + dot(h1, wb) + bc))
        for _ in range(num_layers - 1):
            w_, b_ = nx(), nx()
            h = bf(_swish(dot(h, w_) + b_))

        # residual add in f32
        h = bf(h.astype(jnp.float32) + x2_ref[...].astype(jnp.float32))

        for _ in range(num_layers - 1):
            w_, b_ = nx(), nx()
            h = bf(_swish(dot(h, w_) + b_))

        wf, bfin = nx(), nx()
        out_ref[...] = dot(h, wf) + bfin
    return kernel


# ----------------------------------------------------------------------------
# Wrapper-side parameter packing (padding, dtype, fusions)
# ----------------------------------------------------------------------------
def prepare_params(params, *, hidden, num_relation, num_layers,
                   d_pad, a_pad, h_pad, m_pad, out_pad):
    bf16 = jnp.bfloat16
    it = iter(params)
    nx = lambda: next(it)
    H, R = hidden, num_relation

    def w(x, r, c):
        return _pad2(x, r, c).astype(bf16)

    def b(x, c):
        return _pad2(x, 1, c).astype(jnp.float32)

    # ---- feature-kernel params (lin_1|lin_2 fused; f0a|f1x fused) ----------
    w1, b1 = nx(), nx()
    w2, b2 = nx(), nx()
    w12 = jnp.concatenate([_pad2(w1, d_pad, h_pad),
                           _pad2(w2, d_pad, h_pad)], axis=1).astype(bf16)
    b12 = jnp.concatenate([_pad2(b1, 1, h_pad),
                           _pad2(b2, 1, h_pad)], axis=1).astype(jnp.float32)
    f0a, f0b = nx(), nx()
    f1a, f1b = nx(), nx()
    fm = jnp.concatenate([_pad2(f0a, h_pad, m_pad),
                          _pad2(f1a[:H], h_pad, m_pad)], axis=1).astype(bf16)
    feat = [w12, b12, fm, w(f1a[H:], a_pad, m_pad),
            w(f0b, m_pad, h_pad), w(f1b, m_pad, h_pad)]

    # ---- message-passing / head params --------------------------------------
    mp = []

    def conv():
        ws, bs, wr, br = nx(), nx(), nx(), nx()
        wr = wr.reshape(R, H, H)
        wr = jnp.pad(wr, ((0, 0), (0, h_pad - H), (0, h_pad - H)))
        wr = wr.reshape(R * h_pad, h_pad).astype(bf16)
        return [w(ws, h_pad, h_pad), b(bs + br, h_pad), wr]   # self-bias + rel-bias fused

    mp += conv()
    lw, lb = nx(), nx(); mp += [w(lw, h_pad, h_pad), b(lb, h_pad)]
    mp += conv()
    lw, lb = nx(), nx(); mp += [w(lw, h_pad, h_pad), b(lb, h_pad)]
    wc, bc = nx(), nx()
    mp += [w(wc[:H], h_pad, h_pad), w(wc[H:], h_pad, h_pad), b(bc, h_pad)]
    for _ in range(num_layers - 1):
        lw, lb = nx(), nx(); mp += [w(lw, h_pad, h_pad), b(lb, h_pad)]
    for _ in range(num_layers - 1):
        lw, lb = nx(), nx(); mp += [w(lw, h_pad, h_pad), b(lb, h_pad)]
    wf, bf_ = nx(), nx(); mp += [w(wf, h_pad, out_pad), b(bf_, out_pad)]
    return feat, mp


# ----------------------------------------------------------------------------
# Forward wrapper
# ----------------------------------------------------------------------------
def interaction_block_forward(mono, atom, adj, params, *, hidden, num_relation,
                              num_layers, mid_emb, output_channels,
                              tile_n=None, vmem_cap=None):
    N, input_dim = mono.shape
    all_atom_input_dim = atom.shape[1]
    R = num_relation

    tile_mp_t, tile_feat_t, cap = _tpu_settings()
    if tile_n is not None:
        tile_mp_t = tile_n
    if vmem_cap is not None:
        cap = vmem_cap

    d_pad = _rup(input_dim)
    a_pad = _rup(all_atom_input_dim)
    h_pad = _rup(hidden)
    m_pad = _rup(mid_emb)
    out_pad = _rup(output_channels)

    n_pad0 = _rup(N, LANE)
    tile_mp = min(tile_mp_t, n_pad0)
    n_pad = _rup(n_pad0, tile_mp)

    feat_params, mp_params = prepare_params(
        params, hidden=hidden, num_relation=R, num_layers=num_layers,
        d_pad=d_pad, a_pad=a_pad, h_pad=h_pad, m_pad=m_pad, out_pad=out_pad)
    mp_param_bytes = _nbytes(*mp_params)

    # Shrink the dst-row tile until the estimated kernel-2 working set fits.
    def mp_vmem(t):
        return (2 * R * t * n_pad                      # int8 adjacency slab, 2x buffered
                + 2 * n_pad * 2 * h_pad * 2            # resident src0||src1 (bf16)
                + 2 * t * (2 * h_pad + LANE * 4 + out_pad * 4)
                + 2 * mp_param_bytes
                + 12 * t * 2 * h_pad * 4               # rough f32 intermediates
                + (2 << 20))
    while tile_mp > LANE and mp_vmem(tile_mp) > int(0.75 * cap):
        tile_mp //= 2

    tile_feat = LANE
    for t in (256, 512, 1024):
        if t <= tile_feat_t and n_pad % t == 0:
            tile_feat = t

    num_mp_tiles = n_pad // tile_mp
    num_feat_tiles = n_pad // tile_feat

    # node features, padded + bf16 (lane/sublane dense)
    mono_p = _pad2(mono, n_pad, d_pad).astype(jnp.bfloat16)
    atom_p = _pad2(atom, n_pad, a_pad).astype(jnp.bfloat16)

    # raw 0/1 adjacency in int8 (half the HBM bytes of bf16); per-dst,
    # per-relation inverse degree as a tiny (N, R) f32 array.
    adj_i8 = jnp.pad(adj, ((0, 0), (0, n_pad - N), (0, n_pad - N))).astype(jnp.int8)
    inv_deg = (1.0 / (jnp.sum(adj, axis=2) + EPS)).T           # (N, R) f32
    inv_deg = jnp.pad(inv_deg, ((0, n_pad - N), (0, 0))).astype(jnp.float32)

    const2 = lambda i: (0, 0)
    row = lambda i: (i, 0)
    cparams = pltpu.CompilerParams(dimension_semantics=("parallel",),
                                   vmem_limit_bytes=int(cap))

    # ---- kernel 1: per-node features ----------------------------------------
    feat_flops = (_mm_flops(n_pad, d_pad, 2 * h_pad)
                  + _mm_flops(n_pad, h_pad, 2 * m_pad)
                  + _mm_flops(n_pad, a_pad, m_pad)
                  + 2 * _mm_flops(n_pad, m_pad, h_pad))
    feat_cost = pl.CostEstimate(
        flops=int(feat_flops), transcendentals=int(2 * n_pad * h_pad),
        bytes_accessed=_nbytes(mono_p, atom_p, *feat_params)
        + n_pad * h_pad * (4 + 2))

    src_cat, x2 = pl.pallas_call(
        make_feature_kernel(h_pad, m_pad),
        grid=(num_feat_tiles,),
        in_specs=[pl.BlockSpec((tile_feat, d_pad), row),
                  pl.BlockSpec((tile_feat, a_pad), row)]
                 + [pl.BlockSpec(p.shape, const2) for p in feat_params],
        out_specs=(pl.BlockSpec((tile_feat, 2 * h_pad), row),
                   pl.BlockSpec((tile_feat, h_pad), row)),
        out_shape=(jax.ShapeDtypeStruct((n_pad, 2 * h_pad), jnp.bfloat16),
                   jax.ShapeDtypeStruct((n_pad, h_pad), jnp.bfloat16)),
        compiler_params=cparams,
        cost_estimate=feat_cost,
    )(mono_p, atom_p, *feat_params)

    # ---- kernel 2: relational convs + head, tiled over dst nodes ------------
    mp_flops = (R * _mm_flops(n_pad, n_pad, 2 * h_pad)
                + 2 * _mm_flops(n_pad, R * h_pad, h_pad)
                + (4 + 1 + 2 * (num_layers - 1) + 1) * _mm_flops(n_pad, h_pad, h_pad)
                + _mm_flops(n_pad, 2 * h_pad, h_pad)
                + _mm_flops(n_pad, h_pad, out_pad))
    mp_cost = pl.CostEstimate(
        flops=int(mp_flops),
        transcendentals=int(n_pad * h_pad * (2 * num_layers + 1)),
        bytes_accessed=_nbytes(adj_i8, inv_deg, src_cat, x2, *mp_params)
        + n_pad * out_pad * 4)

    out_p = pl.pallas_call(
        make_mp_kernel(R, num_layers, tile_mp, h_pad),
        grid=(num_mp_tiles,),
        in_specs=[pl.BlockSpec((R, tile_mp, n_pad), lambda i: (0, i, 0)),
                  pl.BlockSpec((tile_mp, R), row),
                  pl.BlockSpec((n_pad, 2 * h_pad), const2),
                  pl.BlockSpec((tile_mp, h_pad), row)]
                 + [pl.BlockSpec(p.shape, const2) for p in mp_params],
        out_specs=pl.BlockSpec((tile_mp, out_pad), row),
        out_shape=jax.ShapeDtypeStruct((n_pad, out_pad), jnp.float32),
        compiler_params=cparams,
        cost_estimate=mp_cost,
    )(adj_i8, inv_deg, src_cat, x2, *mp_params)

    return out_p[:N, :output_channels]


# ----------------------------------------------------------------------------
# Deterministic parameter init (glorot-uniform weights, small uniform biases),
# stored unpadded in f32, already transposed to (in, out) / (1, out).
# ----------------------------------------------------------------------------
def init_params(key, input_dim, all_atom_input_dim, hidden, output_channels,
                mid_emb, num_relation, num_layers):
    keys = iter(jax.random.split(key, 64))

    def glorot(din, dout):
        std = math.sqrt(6.0 / (din + dout))
        return jax.random.uniform(next(keys), (din, dout), jnp.float32, -std, std)

    def bias(dout):
        return jax.random.uniform(next(keys), (1, dout), jnp.float32, -0.1, 0.1)

    H, R = hidden, num_relation
    params = []
    params += [glorot(input_dim, H), bias(H)]                       # lin_1
    params += [glorot(input_dim, H), bias(H)]                       # lin_2
    params += [glorot(H, mid_emb), glorot(mid_emb, H)]              # lin_feature0
    params += [glorot(H + all_atom_input_dim, mid_emb), glorot(mid_emb, H)]  # lin_feature1
    params += [glorot(H, H), bias(H), glorot(R * H, H), bias(H)]    # conv0
    params += [glorot(H, H), bias(H)]                               # lin0
    params += [glorot(H, H), bias(H), glorot(R * H, H), bias(H)]    # conv1
    params += [glorot(H, H), bias(H)]                               # lin1
    params += [glorot(2 * H, H), bias(H)]                           # lins_cat[0]
    for _ in range(num_layers - 1):
        params += [glorot(H, H), bias(H)]                           # lins_cat[1:]
    for _ in range(num_layers - 1):
        params += [glorot(H, H), bias(H)]                           # lins
    params += [glorot(H, output_channels), bias(output_channels)]   # final
    return params


# ----------------------------------------------------------------------------
# Pure-JAX f32 (HIGHEST-precision) reference, independent of the kernel dtypes
# ----------------------------------------------------------------------------
def reference_forward(mono, atom, adj, params, *, hidden, num_relation, num_layers):
    hp = jax.lax.Precision.HIGHEST
    it = iter(params)
    nx = lambda: next(it)

    def lin(x, w, b=None):
        y = jnp.dot(x, w, precision=hp)
        return y + b if b is not None else y

    def rgconv(x_in, w_self, b_self, w_rel, b_rel):
        Hin = x_in.shape[-1]
        out = lin(x_in, w_self, b_self) + b_rel
        for r in range(num_relation):
            Ar = adj[r]
            deg = Ar.sum(axis=1, keepdims=True)
            agg = jnp.dot(Ar, x_in, precision=hp) / (deg + EPS)
            out = out + jnp.dot(agg, w_rel[r * Hin:(r + 1) * Hin], precision=hp)
        return jax.nn.relu(out)

    w, b = nx(), nx(); x1 = _swish(lin(mono, w, b))
    w, b = nx(), nx(); x2 = _swish(lin(mono, w, b))
    wf0a, wf0b = nx(), nx()
    if0 = lin(lin(x1, wf0a), wf0b)
    wf1a, wf1b = nx(), nx()
    if1 = lin(lin(jnp.concatenate([x1, atom], axis=-1), wf1a), wf1b)
    c0 = (nx(), nx(), nx(), nx()); h0 = rgconv(if0, *c0)
    w, b = nx(), nx(); h0 = _swish(lin(h0, w, b))
    c1 = (nx(), nx(), nx(), nx()); h1 = rgconv(if1, *c1)
    w, b = nx(), nx(); h1 = _swish(lin(h1, w, b))
    wc0, bc0 = nx(), nx()
    h = _swish(lin(jnp.concatenate([h0, h1], axis=-1), wc0, bc0))
    for _ in range(num_layers - 1):
        w, b = nx(), nx(); h = _swish(lin(h, w, b))
    h = h + x2
    for _ in range(num_layers - 1):
        w, b = nx(), nx(); h = _swish(lin(h, w, b))
    wf, bf = nx(), nx()
    return lin(h, wf, bf)


if __name__ == "__main__":
    # Small config consistent with the module's constructor
    N = 8
    input_dim = 16
    all_atom_input_dim = 8
    hidden = 32
    output_channels = 24
    mid_emb = 16
    num_relation = 2
    num_layers = 2

    key = jax.random.PRNGKey(0)
    k_mono, k_atom, k_adj, k_par = jax.random.split(key, 4)

    mono_feature = jax.random.normal(k_mono, (N, input_dim), jnp.float32)
    atom_feature = jax.random.normal(k_atom, (N, all_atom_input_dim), jnp.float32)
    # dense per-relation adjacency with 0/1 edge weights
    adj = (jax.random.uniform(k_adj, (num_relation, N, N)) < 0.4).astype(jnp.float32)

    params = init_params(k_par, input_dim, all_atom_input_dim, hidden,
                         output_channels, mid_emb, num_relation, num_layers)

    out = interaction_block_forward(
        mono_feature, atom_feature, adj, params,
        hidden=hidden, num_relation=num_relation, num_layers=num_layers,
        mid_emb=mid_emb, output_channels=output_channels)
    out = jax.block_until_ready(out)

    ref = reference_forward(mono_feature, atom_feature, adj, params,
                            hidden=hidden, num_relation=num_relation,
                            num_layers=num_layers)
    ref = jax.block_until_ready(ref)

    assert out.shape == (N, output_channels)
    max_diff = float(jnp.max(jnp.abs(out - ref)))
    assert max_diff < 5e-2, f"mismatch vs reference: max|diff|={max_diff}"
    print("KERNEL_OK")
</pallas_src>

<mosaic_0001>
module attributes {stable_mosaic.version = 11 : i64} {
  func.func @kernel(%arg0: i32, %arg1: memref<128x128xbf16, #tpu.memory_space<vmem>>, %arg2: memref<128x128xbf16, #tpu.memory_space<vmem>>, %arg3: memref<128x256xbf16, #tpu.memory_space<vmem>>, %arg4: memref<1x256xf32, #tpu.memory_space<vmem>>, %arg5: memref<128x256xbf16, #tpu.memory_space<vmem>>, %arg6: memref<128x128xbf16, #tpu.memory_space<vmem>>, %arg7: memref<128x128xbf16, #tpu.memory_space<vmem>>, %arg8: memref<128x128xbf16, #tpu.memory_space<vmem>>, %arg9: memref<128x256xbf16, #tpu.memory_space<vmem>>, %arg10: memref<128x128xbf16, #tpu.memory_space<vmem>>) attributes {dimension_semantics = [#tpu.dimension_semantics<parallel>], iteration_bounds = array<i64: 1>, scalar_prefetch = 0 : i64, scratch_operands = 0 : i64, tpu.core_type = #tpu.core_type<tc>, window_params = [{transform_indices = @transform_0, window_bounds = array<i64: 128, 128>}, {transform_indices = @transform_1, window_bounds = array<i64: 128, 128>}, {pipeline_mode = #tpu.pipeline_mode<synchronous>, transform_indices = @transform_2, window_bounds = array<i64: 128, 256>}, {pipeline_mode = #tpu.pipeline_mode<synchronous>, transform_indices = @transform_3, window_bounds = array<i64: 1, 256>}, {pipeline_mode = #tpu.pipeline_mode<synchronous>, transform_indices = @transform_4, window_bounds = array<i64: 128, 256>}, {pipeline_mode = #tpu.pipeline_mode<synchronous>, transform_indices = @transform_5, window_bounds = array<i64: 128, 128>}, {pipeline_mode = #tpu.pipeline_mode<synchronous>, transform_indices = @transform_6, window_bounds = array<i64: 128, 128>}, {pipeline_mode = #tpu.pipeline_mode<synchronous>, transform_indices = @transform_7, window_bounds = array<i64: 128, 128>}, {transform_indices = @transform_8, window_bounds = array<i64: 128, 256>}, {transform_indices = @transform_9, window_bounds = array<i64: 128, 128>}]} {
    %c0 = arith.constant 0 : index
    %c0_0 = arith.constant 0 : index
    %0 = vector.load %arg1[%c0, %c0_0] : memref<128x128xbf16, #tpu.memory_space<vmem>>, vector<128x128xbf16>
    %c0_1 = arith.constant 0 : index
    %c0_2 = arith.constant 0 : index
    %1 = vector.load %arg2[%c0_1, %c0_2] : memref<128x128xbf16, #tpu.memory_space<vmem>>, vector<128x128xbf16>
    %c0_3 = arith.constant 0 : index
    %c0_4 = arith.constant 0 : index
    %2 = vector.load %arg3[%c0_3, %c0_4] : memref<128x256xbf16, #tpu.memory_space<vmem>>, vector<128x256xbf16>
    %cst = arith.constant dense<0.000000e+00> : vector<128x256xf32>
    %3 = tpu.matmul %0, %2, %cst {dimension_numbers = #tpu.dot_dimension_numbers<[1], [0], [0], [1], [0, 0, 1, 1], [], []>} : vector<128x128xbf16>, vector<128x256xbf16>, vector<128x256xf32> -> vector<128x256xf32>
    %c0_5 = arith.constant 0 : index
    %c0_6 = arith.constant 0 : index
    %4 = vector.load %arg4[%c0_5, %c0_6] : memref<1x256xf32, #tpu.memory_space<vmem>>, vector<1x256xf32>
    %5 = vector.broadcast %4 : vector<1x256xf32> to vector<128x256xf32>
    %6 = arith.addf %3, %5 : vector<128x256xf32>
    %7 = arith.negf %6 : vector<128x256xf32>
    %8 = math.exp %7 : vector<128x256xf32>
    %cst_7 = arith.constant 1.000000e+00 : f32
    %9 = vector.broadcast %cst_7 : f32 to vector<128x256xf32>
    %10 = arith.addf %9, %8 : vector<128x256xf32>
    %11 = arith.divf %9, %10 : vector<128x256xf32>
    %12 = arith.mulf %6, %11 : vector<128x256xf32>
    %13 = vector.extract_strided_slice %12 {offsets = [0, 0], sizes = [128, 128], strides = [1, 1]} : vector<128x256xf32> to vector<128x128xf32>
    %14 = arith.truncf %13 : vector<128x128xf32> to vector<128x128xbf16>
    %15 = vector.extract_strided_slice %12 {offsets = [0, 128], sizes = [128, 128], strides = [1, 1]} : vector<128x256xf32> to vector<128x128xf32>
    %c0_8 = arith.constant 0 : index
    %c0_9 = arith.constant 0 : index
    %16 = vector.load %arg5[%c0_8, %c0_9] : memref<128x256xbf16, #tpu.memory_space<vmem>>, vector<128x256xbf16>
    %cst_10 = arith.constant dense<0.000000e+00> : vector<128x256xf32>
    %17 = tpu.matmul %14, %16, %cst_10 {dimension_numbers = #tpu.dot_dimension_numbers<[1], [0], [0], [1], [0, 0, 1, 1], [], []>} : vector<128x128xbf16>, vector<128x256xbf16>, vector<128x256xf32> -> vector<128x256xf32>
    %18 = vector.extract_strided_slice %17 {offsets = [0, 0], sizes = [128, 128], strides = [1, 1]} : vector<128x256xf32> to vector<128x128xf32>
    %19 = arith.truncf %18 : vector<128x128xf32> to vector<128x128xbf16>
    %20 = vector.extract_strided_slice %17 {offsets = [0, 128], sizes = [128, 128], strides = [1, 1]} : vector<128x256xf32> to vector<128x128xf32>
    %c0_11 = arith.constant 0 : index
    %c0_12 = arith.constant 0 : index
    %21 = vector.load %arg6[%c0_11, %c0_12] : memref<128x128xbf16, #tpu.memory_space<vmem>>, vector<128x128xbf16>
    %cst_13 = arith.constant dense<0.000000e+00> : vector<128x128xf32>
    %22 = tpu.matmul %1, %21, %cst_13 {dimension_numbers = #tpu.dot_dimension_numbers<[1], [0], [0], [1], [0, 0, 1, 1], [], []>} : vector<128x128xbf16>, vector<128x128xbf16>, vector<128x128xf32> -> vector<128x128xf32>
    %23 = arith.addf %20, %22 : vector<128x128xf32>
    %24 = arith.truncf %23 : vector<128x128xf32> to vector<128x128xbf16>
    %c0_14 = arith.constant 0 : index
    %c0_15 = arith.constant 0 : index
    %25 = vector.load %arg7[%c0_14, %c0_15] : memref<128x128xbf16, #tpu.memory_space<vmem>>, vector<128x128xbf16>
    %cst_16 = arith.constant dense<0.000000e+00> : vector<128x128xf32>
    %26 = tpu.matmul %19, %25, %cst_16 {dimension_numbers = #tpu.dot_dimension_numbers<[1], [0], [0], [1], [0, 0, 1, 1], [], []>} : vector<128x128xbf16>, vector<128x128xbf16>, vector<128x128xf32> -> vector<128x128xf32>
    %c0_17 = arith.constant 0 : index
    %c0_18 = arith.constant 0 : index
    %27 = vector.load %arg8[%c0_17, %c0_18] : memref<128x128xbf16, #tpu.memory_space<vmem>>, vector<128x128xbf16>
    %cst_19 = arith.constant dense<0.000000e+00> : vector<128x128xf32>
    %28 = tpu.matmul %24, %27, %cst_19 {dimension_numbers = #tpu.dot_dimension_numbers<[1], [0], [0], [1], [0, 0, 1, 1], [], []>} : vector<128x128xbf16>, vector<128x128xbf16>, vector<128x128xf32> -> vector<128x128xf32>
    %29 = tpu.concatenate %26, %28 in 1 : vector<128x128xf32>, vector<128x128xf32> -> vector<128x256xf32>
    %30 = arith.truncf %29 : vector<128x256xf32> to vector<128x256xbf16>
    %c0_20 = arith.constant 0 : index
    %c0_21 = arith.constant 0 : index
    %31 = vector.load %arg9[%c0_20, %c0_21] : memref<128x256xbf16, #tpu.memory_space<vmem>>, vector<128x256xbf16>
    tpu.vector_store %arg9[%c0_20, %c0_21], %30 {strides = array<i32>} : memref<128x256xbf16, #tpu.memory_space<vmem>>, vector<128x256xbf16>,
    %32 = arith.truncf %15 : vector<128x128xf32> to vector<128x128xbf16>
    %c0_22 = arith.constant 0 : index
    %c0_23 = arith.constant 0 : index
    %33 = vector.load %arg10[%c0_22, %c0_23] : memref<128x128xbf16, #tpu.memory_space<vmem>>, vector<128x128xbf16>
    tpu.vector_store %arg10[%c0_22, %c0_23], %32 {strides = array<i32>} : memref<128x128xbf16, #tpu.memory_space<vmem>>, vector<128x128xbf16>,
    return
  }
  func.func @transform_0(%arg0: i32) -> (i32, i32) {
    %c0_i32 = arith.constant 0 : i32
    %c0_i32_0 = arith.constant 0 : i32
    return %arg0, %c0_i32 : i32, i32
  }
  func.func @transform_1(%arg0: i32) -> (i32, i32) {
    %c0_i32 = arith.constant 0 : i32
    %c0_i32_0 = arith.constant 0 : i32
    return %arg0, %c0_i32 : i32, i32
  }
  func.func @transform_2(%arg0: i32) -> (i32, i32) {
    %c0_i32 = arith.constant 0 : i32
    %c0_i32_0 = arith.constant 0 : i32
    %c0_i32_1 = arith.constant 0 : i32
    return %c0_i32, %c0_i32_0 : i32, i32
  }
  func.func @transform_3(%arg0: i32) -> (i32, i32) {
    %c0_i32 = arith.constant 0 : i32
    %c0_i32_0 = arith.constant 0 : i32
    %c0_i32_1 = arith.constant 0 : i32
    return %c0_i32, %c0_i32_0 : i32, i32
  }
  func.func @transform_4(%arg0: i32) -> (i32, i32) {
    %c0_i32 = arith.constant 0 : i32
    %c0_i32_0 = arith.constant 0 : i32
    %c0_i32_1 = arith.constant 0 : i32
    return %c0_i32, %c0_i32_0 : i32, i32
  }
  func.func @transform_5(%arg0: i32) -> (i32, i32) {
    %c0_i32 = arith.constant 0 : i32
    %c0_i32_0 = arith.constant 0 : i32
    %c0_i32_1 = arith.constant 0 : i32
    return %c0_i32, %c0_i32_0 : i32, i32
  }
  func.func @transform_6(%arg0: i32) -> (i32, i32) {
    %c0_i32 = arith.constant 0 : i32
    %c0_i32_0 = arith.constant 0 : i32
    %c0_i32_1 = arith.constant 0 : i32
    return %c0_i32, %c0_i32_0 : i32, i32
  }
  func.func @transform_7(%arg0: i32) -> (i32, i32) {
    %c0_i32 = arith.constant 0 : i32
    %c0_i32_0 = arith.constant 0 : i32
    %c0_i32_1 = arith.constant 0 : i32
    return %c0_i32, %c0_i32_0 : i32, i32
  }
  func.func @transform_8(%arg0: i32) -> (i32, i32) {
    %c0_i32 = arith.constant 0 : i32
    %c0_i32_0 = arith.constant 0 : i32
    return %arg0, %c0_i32 : i32, i32
  }
  func.func @transform_9(%arg0: i32) -> (i32, i32) {
    %c0_i32 = arith.constant 0 : i32
    %c0_i32_0 = arith.constant 0 : i32
    return %arg0, %c0_i32 : i32, i32
  }
}

</mosaic_0001>

<llo_original>
// kernel: tpu_custom_call.1
$region0: #{tpu_custom_call.1}
  #allocation0 [shape = 'u32[]', space=smem, size = 0x4, offset = 0x4, fixed_abs, tag = 'smem constant byte address 0x4 - core index']
  #allocation1 [shape = 'u32[144,128]{1,0:T(1,128)}', space=vmem, size = 0x12000, scoped, tag = 'internal scratch']
  %s0 = inlined_call_operand.hbm [shape: bf16[128,128], index: 0, kind: input, shape index: {}]
  %s1 = inlined_call_operand.hbm [shape: bf16[128,128], index: 1, kind: input, shape index: {}]
  %s2 = inlined_call_operand.hbm [shape: bf16[128,256], index: 2, kind: input, shape index: {}]
  %s3 = inlined_call_operand.vmem [shape: f32[1,256], index: 3, kind: input, shape index: {}]
  %s4 = inlined_call_operand.hbm [shape: bf16[128,256], index: 4, kind: input, shape index: {}]
  %s5 = inlined_call_operand.hbm [shape: bf16[128,128], index: 5, kind: input, shape index: {}]
  %s6 = inlined_call_operand.hbm [shape: bf16[128,128], index: 6, kind: input, shape index: {}]
  %s7 = inlined_call_operand.hbm [shape: bf16[128,128], index: 7, kind: input, shape index: {}]
  %s8 = inlined_call_operand.hbm [shape: bf16[128,256], index: 8, kind: output, shape index: {0}]
  %s9 = inlined_call_operand.hbm [shape: bf16[128,128], index: 9, kind: output, shape index: {1}]
  %10 = xla_tuple %s8, %s9
  %s11 = sld [smem:[#allocation0]]
  $region78: #{tpu_custom_call.1} parent=0
    _
  %s13 = ssub.s32 1, %s11
  %s14 = scalar_select 0, %s13, %s11
  $region1: #{tpu_custom_call.1} parent=0
    #allocation2 [shape = 'u8[32768]{0}', space=vmem, size = 0x8000, scoped, tag = 'input window, operand 0, single buffered']
    #allocation3 [shape = 's32[1]{0}', space=sflag, size = 0x4, scoped, tag = 'scoped memory for tpu_custom_call.1']
    #allocation4 [shape = 's32[1]{0}', space=sflag, size = 0x4, scoped, tag = 'scoped memory for tpu_custom_call.1']
    #allocation5 [shape = 'u8[32768]{0}', space=vmem, size = 0x8000, scoped, tag = 'input window, operand 1, single buffered']
    #allocation6 [shape = 's32[1]{0}', space=sflag, size = 0x4, scoped, tag = 'scoped memory for tpu_custom_call.1']
    #allocation7 [shape = 'u8[65536]{0}', space=vmem, size = 0x10000, scoped, tag = 'input window, operand 2, single buffered']
    #allocation8 [shape = 'u8[65536]{0}', space=vmem, size = 0x10000, scoped, tag = 'input window, operand 4, single buffered']
    #allocation9 [shape = 's32[1]{0}', space=sflag, size = 0x4, scoped, tag = 'scoped memory for tpu_custom_call.1']
    #allocation10 [shape = 'u8[32768]{0}', space=vmem, size = 0x8000, scoped, tag = 'input window, operand 5, single buffered']
    #allocation11 [shape = 'u8[32768]{0}', space=vmem, size = 0x8000, scoped, tag = 'input window, operand 6, single buffered']
    #allocation12 [shape = 's32[1]{0}', space=sflag, size = 0x4, scoped, tag = 'scoped memory for tpu_custom_call.1']
    #allocation13 [shape = 'u8[32768]{0}', space=vmem, size = 0x8000, scoped, tag = 'input window, operand 7, single buffered']
    #allocation14 [shape = 'u8[65536]{0}', space=vmem, size = 0x10000, scoped, tag = 'output window, operand 0, single buffered']
    #allocation15 [shape = 'u8[32768]{0}', space=vmem, size = 0x8000, scoped, tag = 'output window, operand 1, single buffered']
    #allocation16 [shape = 's32[1]{0}', space=sflag, size = 0x4, scoped, tag = 'scoped memory for tpu_custom_call.1']
    %15 = vsyncpa [#allocation3], 0
    %16 = vsyncpa [#allocation6], 0
    %17 = vsyncpa [#allocation9], 0
    %18 = vsyncpa [#allocation12], 0
    %19 = vsyncpa [#allocation4], 0
    %20 = vsyncpa [#allocation16], 0
    // Predicated region
    $region2: #{tpu_custom_call.1} parent=1 // pred_check
      _
    $region3: #{tpu_custom_call.1} parent=1 // pred_check_branch
      %22 = sbr.rel (0) target = $region5
    $region4: #{tpu_custom_call.1} parent=1 // pred_region
      %s24 = ssub.s32 1024, 1024
      %25 = vsyncadd [#allocation3], %s24
      %s26 = sshll.u32 [#allocation2], 4
      %s27 = int_to_ptr.vmem [resolvable:$true] %s26
      %32 = dma.hbm_to_vmem [thread:$0]  %s0, 1024, %s27, [#allocation3], 64, 64, 4
    $region5: #{tpu_custom_call.1} parent=1 // pred_fallthru
      _
    // Predicated region
    $region6: #{tpu_custom_call.1} parent=1 // pred_check
      _
    $region7: #{tpu_custom_call.1} parent=1 // pred_check_branch
      %34 = sbr.rel (0) target = $region9
    $region8: #{tpu_custom_call.1} parent=1 // pred_region
      %s36 = ssub.s32 1024, 1024
      %37 = vsyncadd [#allocation6], %s36
      %s38 = sshll.u32 [#allocation5], 4
      %s39 = int_to_ptr.vmem [resolvable:$true] %s38
      %44 = dma.hbm_to_vmem [thread:$0]  %s1, 1024, %s39, [#allocation6], 64, 64, 4
    $region9: #{tpu_custom_call.1} parent=1 // pred_fallthru
      _
    // Predicated region
    $region10: #{tpu_custom_call.1} parent=1 // pred_check
      _
    $region11: #{tpu_custom_call.1} parent=1 // pred_check_branch
      %46 = sbr.rel (0) target = $region13
    $region12: #{tpu_custom_call.1} parent=1 // pred_region
      %s48 = ssub.s32 2048, 2048
      %49 = vsyncadd [#allocation6], %s48
      %s50 = sshll.u32 [#allocation7], 4
      %s51 = int_to_ptr.vmem [resolvable:$true] %s50
      %56 = dma.hbm_to_vmem [thread:$0]  %s2, 2048, %s51, [#allocation6], 128, 128, 8
    $region13: #{tpu_custom_call.1} parent=1 // pred_fallthru
      _
    // Predicated region
    $region14: #{tpu_custom_call.1} parent=1 // pred_check
      _
    $region15: #{tpu_custom_call.1} parent=1 // pred_check_branch
      %58 = sbr.rel (0) target = $region17
    $region16: #{tpu_custom_call.1} parent=1 // pred_region
      _
    $region17: #{tpu_custom_call.1} parent=1 // pred_fallthru
      _
    // Predicated region
    $region18: #{tpu_custom_call.1} parent=1 // pred_check
      _
    $region19: #{tpu_custom_call.1} parent=1 // pred_check_branch
      %60 = sbr.rel (0) target = $region21
    $region20: #{tpu_custom_call.1} parent=1 // pred_region
      %s62 = ssub.s32 2048, 2048
      %63 = vsyncadd [#allocation9], %s62
      %s64 = sshll.u32 [#allocation8], 4
      %s65 = int_to_ptr.vmem [resolvable:$true] %s64
      %70 = dma.hbm_to_vmem [thread:$0]  %s4, 2048, %s65, [#allocation9], 128, 128, 8
    $region21: #{tpu_custom_call.1} parent=1 // pred_fallthru
      _
    // Predicated region
    $region22: #{tpu_custom_call.1} parent=1 // pred_check
      _
    $region23: #{tpu_custom_call.1} parent=1 // pred_check_branch
      %72 = sbr.rel (0) target = $region25
    $region24: #{tpu_custom_call.1} parent=1 // pred_region
      %s74 = ssub.s32 1024, 1024
      %75 = vsyncadd [#allocation9], %s74
      %s76 = sshll.u32 [#allocation10], 4
      %s77 = int_to_ptr.vmem [resolvable:$true] %s76
      %82 = dma.hbm_to_vmem [thread:$0]  %s5, 1024, %s77, [#allocation9], 64, 64, 4
    $region25: #{tpu_custom_call.1} parent=1 // pred_fallthru
      _
    // Predicated region
    $region26: #{tpu_custom_call.1} parent=1 // pred_check
      _
    $region27: #{tpu_custom_call.1} parent=1 // pred_check_branch
      %84 = sbr.rel (0) target = $region29
    $region28: #{tpu_custom_call.1} parent=1 // pred_region
      %s86 = ssub.s32 1024, 1024
      %87 = vsyncadd [#allocation12], %s86
      %s88 = sshll.u32 [#allocation11], 4
      %s89 = int_to_ptr.vmem [resolvable:$true] %s88
      %94 = dma.hbm_to_vmem [thread:$0]  %s6, 1024, %s89, [#allocation12], 64, 64, 4
    $region29: #{tpu_custom_call.1} parent=1 // pred_fallthru
      _
    // Predicated region
    $region30: #{tpu_custom_call.1} parent=1 // pred_check
      _
    $region31: #{tpu_custom_call.1} parent=1 // pred_check_branch
      %96 = sbr.rel (0) target = $region33
    $region32: #{tpu_custom_call.1} parent=1 // pred_region
      %s98 = ssub.s32 1024, 1024
      %99 = vsyncadd [#allocation12], %s98
      %s100 = sshll.u32 [#allocation13], 4
      %s101 = int_to_ptr.vmem [resolvable:$true] %s100
      %106 = dma.hbm_to_vmem [thread:$0]  %s7, 1024, %s101, [#allocation12], 64, 64, 4
    $region33: #{tpu_custom_call.1} parent=1 // pred_fallthru
      _
    // Predicated region
    $region34: #{tpu_custom_call.1} parent=1 // pred_check
      _
    $region35: #{tpu_custom_call.1} parent=1 // pred_check_branch
      %108 = sbr.rel (0) target = $region37
    $region36: #{tpu_custom_call.1} parent=1 // pred_region
      %109 = dma.done [#allocation3], 1024
    $region37: #{tpu_custom_call.1} parent=1 // pred_fallthru
      _
    // Predicated region
    $region38: #{tpu_custom_call.1} parent=1 // pred_check
      _
    $region39: #{tpu_custom_call.1} parent=1 // pred_check_branch
      %111 = sbr.rel (0) target = $region41
    $region40: #{tpu_custom_call.1} parent=1 // pred_region
      %112 = dma.done [#allocation6], 1024
    $region41: #{tpu_custom_call.1} parent=1 // pred_fallthru
      _
    // Predicated region
    $region42: #{tpu_custom_call.1} parent=1 // pred_check
      _
    $region43: #{tpu_custom_call.1} parent=1 // pred_check_branch
      %114 = sbr.rel (0) target = $region45
    $region44: #{tpu_custom_call.1} parent=1 // pred_region
      %115 = dma.done [#allocation6], 2048
    $region45: #{tpu_custom_call.1} parent=1 // pred_fallthru
      _
    // Predicated region
    $region46: #{tpu_custom_call.1} parent=1 // pred_check
      _
    $region47: #{tpu_custom_call.1} parent=1 // pred_check_branch
      %117 = sbr.rel (0) target = $region49
    $region48: #{tpu_custom_call.1} parent=1 // pred_region
      %118 = dma.done [#allocation9], 2048
    $region49: #{tpu_custom_call.1} parent=1 // pred_fallthru
      _
    // Predicated region
    $region50: #{tpu_custom_call.1} parent=1 // pred_check
      _
    $region51: #{tpu_custom_call.1} parent=1 // pred_check_branch
      %120 = sbr.rel (0) target = $region53
    $region52: #{tpu_custom_call.1} parent=1 // pred_region
      %121 = dma.done [#allocation9], 1024
    $region53: #{tpu_custom_call.1} parent=1 // pred_fallthru
      _
    // Predicated region
    $region54: #{tpu_custom_call.1} parent=1 // pred_check
      _
    $region55: #{tpu_custom_call.1} parent=1 // pred_check_branch
      %123 = sbr.rel (0) target = $region57
    $region56: #{tpu_custom_call.1} parent=1 // pred_region
      %124 = dma.done [#allocation12], 1024
    $region57: #{tpu_custom_call.1} parent=1 // pred_fallthru
      _
    // Predicated region
    $region58: #{tpu_custom_call.1} parent=1 // pred_check
      _
    $region59: #{tpu_custom_call.1} parent=1 // pred_check_branch
      %126 = sbr.rel (0) target = $region61
    $region60: #{tpu_custom_call.1} parent=1 // pred_region
      %127 = dma.done [#allocation12], 1024
    $region61: #{tpu_custom_call.1} parent=1 // pred_fallthru
      _
    %v129 = vld [vmem:[#allocation2] sm:$0xf]
    %v130 = vld [vmem:[#allocation2 + $0x4] sm:$0xf]
    %v131 = vld [vmem:[#allocation2 + $0x8] sm:$0xf]
    %v132 = vld [vmem:[#allocation2 + $0xc] sm:$0xf]
    %v133 = vld [vmem:[#allocation2 + $0x10] sm:$0xf]
    %v134 = vld [vmem:[#allocation2 + $0x14] sm:$0xf]
    %v135 = vld [vmem:[#allocation2 + $0x18] sm:$0xf]
    %v136 = vld [vmem:[#allocation2 + $0x1c] sm:$0xf]
    %v137 = vld [vmem:[#allocation2 + $0x20] sm:$0xf]
    %v138 = vld [vmem:[#allocation2 + $0x24] sm:$0xf]
    %v139 = vld [vmem:[#allocation2 + $0x28] sm:$0xf]
    %v140 = vld [vmem:[#allocation2 + $0x2c] sm:$0xf]
    %v141 = vld [vmem:[#allocation2 + $0x30] sm:$0xf]
    %v142 = vld [vmem:[#allocation2 + $0x34] sm:$0xf]
    %v143 = vld [vmem:[#allocation2 + $0x38] sm:$0xf]
    %v144 = vld [vmem:[#allocation2 + $0x3c] sm:$0xf]
    %v145 = vld [vmem:[#allocation5] sm:$0xf]
    %v146 = vld [vmem:[#allocation5 + $0x4] sm:$0xf]
    %v147 = vld [vmem:[#allocation5 + $0x8] sm:$0xf]
    %v148 = vld [vmem:[#allocation5 + $0xc] sm:$0xf]
    %v149 = vld [vmem:[#allocation5 + $0x10] sm:$0xf]
    %v150 = vld [vmem:[#allocation5 + $0x14] sm:$0xf]
    %v151 = vld [vmem:[#allocation5 + $0x18] sm:$0xf]
    %v152 = vld [vmem:[#allocation5 + $0x1c] sm:$0xf]
    %v153 = vld [vmem:[#allocation5 + $0x20] sm:$0xf]
    %v154 = vld [vmem:[#allocation5 + $0x24] sm:$0xf]
    %v155 = vld [vmem:[#allocation5 + $0x28] sm:$0xf]
    %v156 = vld [vmem:[#allocation5 + $0x2c] sm:$0xf]
    %v157 = vld [vmem:[#allocation5 + $0x30] sm:$0xf]
    %v158 = vld [vmem:[#allocation5 + $0x34] sm:$0xf]
    %v159 = vld [vmem:[#allocation5 + $0x38] sm:$0xf]
    %v160 = vld [vmem:[#allocation5 + $0x3c] sm:$0xf]
    %v161 = vld [vmem:[#allocation7] sm:$0xff]
    %v162 = vld [vmem:[#allocation7 + $0x8] sm:$0xff]
    %v163 = vld [vmem:[#allocation7 + $0x10] sm:$0xff]
    %v164 = vld [vmem:[#allocation7 + $0x18] sm:$0xff]
    %v165 = vld [vmem:[#allocation7 + $0x20] sm:$0xff]
    %v166 = vld [vmem:[#allocation7 + $0x28] sm:$0xff]
    %v167 = vld [vmem:[#allocation7 + $0x30] sm:$0xff]
    %v168 = vld [vmem:[#allocation7 + $0x38] sm:$0xff]
    %v169 = vld [vmem:[#allocation7 + $0x40] sm:$0xff]
    %v170 = vld [vmem:[#allocation7 + $0x48] sm:$0xff]
    %v171 = vld [vmem:[#allocation7 + $0x50] sm:$0xff]
    %v172 = vld [vmem:[#allocation7 + $0x58] sm:$0xff]
    %v173 = vld [vmem:[#allocation7 + $0x60] sm:$0xff]
    %v174 = vld [vmem:[#allocation7 + $0x68] sm:$0xff]
    %v175 = vld [vmem:[#allocation7 + $0x70] sm:$0xff]
    %v176 = vld [vmem:[#allocation7 + $0x78] sm:$0xff]
    %v177 = vld [vmem:[%s3] sm:$0x3]
    %v179 = vlaneseq
    %v180 = vshrl.u32 %v179, 7
    %v181 = vsub.s32 0, %v180
    %v182 = vrot.slane %v177, %v181
    %v183 = vlaneseq
    %v184 = vshrl.u32 %v183, 7
    %v185 = vsub.s32 1, %v184
    %v186 = vrot.slane %v177, %v185
    %v205 = vunpack.c.l.b16 %v129
    %v206 = vunpack.c.l.b16 %v130
    %v207 = vunpack.c.l.b16 %v131
    %v208 = vunpack.c.l.b16 %v132
    %v209 = vunpack.c.l.b16 %v133
    %v210 = vunpack.c.l.b16 %v134
    %v211 = vunpack.c.l.b16 %v135
    %v212 = vunpack.c.l.b16 %v136
    %v213 = vunpack.c.l.b16 %v137
    %v214 = vunpack.c.l.b16 %v138
    %v215 = vunpack.c.l.b16 %v139
    %v216 = vunpack.c.l.b16 %v140
    %v217 = vunpack.c.l.b16 %v141
    %v218 = vunpack.c.l.b16 %v142
    %v219 = vunpack.c.l.b16 %v143
    %v220 = vunpack.c.l.b16 %v144
    %v221 = vpack.c.b16 %v206, %v205
    %v222 = vpack.c.b16 %v208, %v207
    %v223 = vpack.c.b16 %v210, %v209
    %v224 = vpack.c.b16 %v212, %v211
    %v225 = vpack.c.b16 %v214, %v213
    %v226 = vpack.c.b16 %v216, %v215
    %v227 = vpack.c.b16 %v218, %v217
    %v228 = vpack.c.b16 %v220, %v219
    %v253 = vunpack.c.l.b16 %v161
    %v254 = vunpack.c.h.b16 %v161
    %v255 = vunpack.c.l.b16 %v162
    %v256 = vunpack.c.h.b16 %v162
    %v257 = vunpack.c.l.b16 %v163
    %v258 = vunpack.c.h.b16 %v163
    %v259 = vunpack.c.l.b16 %v164
    %v260 = vunpack.c.h.b16 %v164
    %v261 = vunpack.c.l.b16 %v165
    %v262 = vunpack.c.h.b16 %v165
    %v263 = vunpack.c.l.b16 %v166
    %v264 = vunpack.c.h.b16 %v166
    %v265 = vunpack.c.l.b16 %v167
    %v266 = vunpack.c.h.b16 %v167
    %v267 = vunpack.c.l.b16 %v168
    %v268 = vunpack.c.h.b16 %v168
    %v269 = vunpack.c.l.b16 %v169
    %v270 = vunpack.c.h.b16 %v169
    %v271 = vunpack.c.l.b16 %v170
    %v272 = vunpack.c.h.b16 %v170
    %v273 = vunpack.c.l.b16 %v171
    %v274 = vunpack.c.h.b16 %v171
    %v275 = vunpack.c.l.b16 %v172
    %v276 = vunpack.c.h.b16 %v172
    %v277 = vunpack.c.l.b16 %v173
    %v278 = vunpack.c.h.b16 %v173
    %v279 = vunpack.c.l.b16 %v174
    %v280 = vunpack.c.h.b16 %v174
    %v281 = vunpack.c.l.b16 %v175
    %v282 = vunpack.c.h.b16 %v175
    %v283 = vunpack.c.l.b16 %v176
    %v284 = vunpack.c.h.b16 %v176
    %v285 = vpack.c.b16 %v255, %v253
    %v286 = vpack.c.b16 %v256, %v254
    %v287 = vpack.c.b16 %v259, %v257
    %v288 = vpack.c.b16 %v260, %v258
    %v289 = vpack.c.b16 %v263, %v261
    %v290 = vpack.c.b16 %v264, %v262
    %v291 = vpack.c.b16 %v267, %v265
    %v292 = vpack.c.b16 %v268, %v266
    %v293 = vpack.c.b16 %v271, %v269
    %v294 = vpack.c.b16 %v272, %v270
    %v295 = vpack.c.b16 %v275, %v273
    %v296 = vpack.c.b16 %v276, %v274
    %v297 = vpack.c.b16 %v279, %v277
    %v298 = vpack.c.b16 %v280, %v278
    %v299 = vpack.c.b16 %v283, %v281
    %v300 = vpack.c.b16 %v284, %v282
    %317 = vmatprep.subr.bf16.mxu0 %v300
    %318 = vmatpush1.bf16.msra.mxu0 %v299
    %319 = vmatprep.subr.bf16.mxu0 %v298
    %320 = vmatpush1.bf16.msra.mxu0 %v297
    %321 = vmatprep.subr.bf16.mxu0 %v296
    %322 = vmatpush1.bf16.msra.mxu0 %v295
    %323 = vmatprep.subr.bf16.mxu0 %v294
    %324 = vmatpush1.bf16.msra.mxu0 %v293
    %325 = vmatprep.subr.bf16.mxu0 %v292
    %326 = vmatpush1.bf16.msra.mxu0 %v291
    %327 = vmatprep.subr.bf16.mxu0 %v290
    %328 = vmatpush1.bf16.msra.mxu0 %v289
    %329 = vmatprep.subr.bf16.mxu0 %v288
    %330 = vmatpush1.bf16.msra.mxu0 %v287
    %331 = vmatprep.subr.bf16.mxu0 %v286
    %332 = vmatpush1.bf16.msra.mxu0 %v285
    %333 = vmatprep.subr.bf16.mxu0 0
    %334 = vmatpush2.bf16.msra.mxu0 0
    %335 = vmatprep.subr.bf16.mxu0 0
    %336 = vmatpush2.bf16.msra.mxu0 0
    %337 = vmatprep.subr.bf16.mxu0 0
    %338 = vmatpush2.bf16.msra.mxu0 0
    %339 = vmatprep.subr.bf16.mxu0 0
    %340 = vmatpush2.bf16.msra.mxu0 0
    %341 = vmatprep.subr.bf16.mxu0 0
    %342 = vmatpush2.bf16.msra.mxu0 0
    %343 = vmatprep.subr.bf16.mxu0 0
    %344 = vmatpush2.bf16.msra.mxu0 0
    %345 = vmatprep.subr.bf16.mxu0 0
    %346 = vmatpush2.bf16.msra.mxu0 0
    %347 = vmatprep.subr.bf16.mxu0 0
    %348 = vmatpush2.bf16.msra.mxu0 0
    %349 = vmatprep.mubr.bf16.mxu0 0
    %350 = vmatmul.mubr.bf16.gmra.mxu0 %v221
    %v351 = vpop.f32.mrf.mxu0
    %v352 = vadd.f32 %v182, %v351
    %v353 = vpop.f32.mrf.mxu0
    %v354 = vadd.f32 %v186, %v353
    %v355 = vpop.f32.mrf.mxu0
    %v356 = vadd.f32 %v182, %v355
    %v357 = vpop.f32.mrf.mxu0
    %v358 = vadd.f32 %v186, %v357
    %359 = vmatprep.mubr.bf16.mxu0 0
    %360 = vmatmul.mubr.bf16.gmra.mxu0 %v222
    %v361 = vpop.f32.mrf.mxu0
    %v362 = vadd.f32 %v182, %v361
    %v363 = vpop.f32.mrf.mxu0
    %v364 = vadd.f32 %v186, %v363
    %v365 = vpop.f32.mrf.mxu0
    %v366 = vadd.f32 %v182, %v365
    %v367 = vpop.f32.mrf.mxu0
    %v368 = vadd.f32 %v186, %v367
    %369 = vmatprep.mubr.bf16.mxu0 0
    %370 = vmatmul.mubr.bf16.gmra.mxu0 %v223
    %v371 = vpop.f32.mrf.mxu0
    %v372 = vadd.f32 %v182, %v371
    %v373 = vpop.f32.mrf.mxu0
    %v374 = vadd.f32 %v186, %v373
    %v375 = vpop.f32.mrf.mxu0
    %v376 = vadd.f32 %v182, %v375
    %v377 = vpop.f32.mrf.mxu0
    %v378 = vadd.f32 %v186, %v377
    %379 = vmatprep.mubr.bf16.mxu0 0
    %380 = vmatmul.mubr.bf16.gmra.mxu0 %v224
    %v381 = vpop.f32.mrf.mxu0
    %v382 = vadd.f32 %v182, %v381
    %v383 = vpop.f32.mrf.mxu0
    %v384 = vadd.f32 %v186, %v383
    %v385 = vpop.f32.mrf.mxu0
    %v386 = vadd.f32 %v182, %v385
    %v387 = vpop.f32.mrf.mxu0
    %v388 = vadd.f32 %v186, %v387
    %389 = vmatprep.mubr.bf16.mxu0 0
    %390 = vmatmul.mubr.bf16.gmra.mxu0 %v225
    %v391 = vpop.f32.mrf.mxu0
    %v392 = vadd.f32 %v182, %v391
    %v393 = vpop.f32.mrf.mxu0
    %v394 = vadd.f32 %v186, %v393
    %v395 = vpop.f32.mrf.mxu0
    %v396 = vadd.f32 %v182, %v395
    %v397 = vpop.f32.mrf.mxu0
    %v398 = vadd.f32 %v186, %v397
    %399 = vmatprep.mubr.bf16.mxu0 0
    %400 = vmatmul.mubr.bf16.gmra.mxu0 %v226
    %v401 = vpop.f32.mrf.mxu0
    %v402 = vadd.f32 %v182, %v401
    %v403 = vpop.f32.mrf.mxu0
    %v404 = vadd.f32 %v186, %v403
    %v405 = vpop.f32.mrf.mxu0
    %v406 = vadd.f32 %v182, %v405
    %v407 = vpop.f32.mrf.mxu0
    %v408 = vadd.f32 %v186, %v407
    %409 = vmatprep.mubr.bf16.mxu0 0
    %410 = vmatmul.mubr.bf16.gmra.mxu0 %v227
    %v411 = vpop.f32.mrf.mxu0
    %v412 = vadd.f32 %v182, %v411
    %v413 = vpop.f32.mrf.mxu0
    %v414 = vadd.f32 %v186, %v413
    %v415 = vpop.f32.mrf.mxu0
    %v416 = vadd.f32 %v182, %v415
    %v417 = vpop.f32.mrf.mxu0
    %v418 = vadd.f32 %v186, %v417
    %419 = vmatprep.mubr.bf16.mxu0 0
    %420 = vmatmul.mubr.bf16.gmra.mxu0 %v228
    %v421 = vpop.f32.mrf.mxu0
    %v422 = vadd.f32 %v182, %v421
    %v423 = vpop.f32.mrf.mxu0
    %v424 = vadd.f32 %v186, %v423
    %v425 = vpop.f32.mrf.mxu0
    %v426 = vadd.f32 %v182, %v425
    %v427 = vpop.f32.mrf.mxu0
    %v428 = vadd.f32 %v186, %v427
    %429 = vdwg.mxu0
    %v430 = vxor.u32 %v352, 2147483648
    %v431 = vxor.u32 %v354, 2147483648
    %v432 = vxor.u32 %v356, 2147483648
    %v433 = vxor.u32 %v358, 2147483648
    %v434 = vxor.u32 %v362, 2147483648
    %v435 = vxor.u32 %v364, 2147483648
    %v436 = vxor.u32 %v366, 2147483648
    %v437 = vxor.u32 %v368, 2147483648
    %v438 = vxor.u32 %v372, 2147483648
    %v439 = vxor.u32 %v374, 2147483648
    %v440 = vxor.u32 %v376, 2147483648
    %v441 = vxor.u32 %v378, 2147483648
    %v442 = vxor.u32 %v382, 2147483648
    %v443 = vxor.u32 %v384, 2147483648
    %v444 = vxor.u32 %v386, 2147483648
    %v445 = vxor.u32 %v388, 2147483648
    %v446 = vxor.u32 %v392, 2147483648
    %v447 = vxor.u32 %v394, 2147483648
    %v448 = vxor.u32 %v396, 2147483648
    %v449 = vxor.u32 %v398, 2147483648
    %v450 = vxor.u32 %v402, 2147483648
    %v451 = vxor.u32 %v404, 2147483648
    %v452 = vxor.u32 %v406, 2147483648
    %v453 = vxor.u32 %v408, 2147483648
    %v454 = vxor.u32 %v412, 2147483648
    %v455 = vxor.u32 %v414, 2147483648
    %v456 = vxor.u32 %v416, 2147483648
    %v457 = vxor.u32 %v418, 2147483648
    %v458 = vxor.u32 %v422, 2147483648
    %v459 = vxor.u32 %v424, 2147483648
    %v460 = vxor.u32 %v426, 2147483648
    %v461 = vxor.u32 %v428, 2147483648
    %v462 = vmul.f32 %v430, 1.442695
    %v463 = vpow.pop %v462
    %v464 = vmul.f32 %v431, 1.442695
    %v465 = vpow.pop %v464
    %v466 = vmul.f32 %v432, 1.442695
    %v467 = vpow.pop %v466
    %v468 = vmul.f32 %v433, 1.442695
    %v469 = vpow.pop %v468
    %v470 = vmul.f32 %v434, 1.442695
    %v471 = vpow.pop %v470
    %v472 = vmul.f32 %v435, 1.442695
    %v473 = vpow.pop %v472
    %v474 = vmul.f32 %v436, 1.442695
    %v475 = vpow.pop %v474
    %v476 = vmul.f32 %v437, 1.442695
    %v477 = vpow.pop %v476
    %v478 = vmul.f32 %v438, 1.442695
    %v479 = vpow.pop %v478
    %v480 = vmul.f32 %v439, 1.442695
    %v481 = vpow.pop %v480
    %v482 = vmul.f32 %v440, 1.442695
    %v483 = vpow.pop %v482
    %v484 = vmul.f32 %v441, 1.442695
    %v485 = vpow.pop %v484
    %v486 = vmul.f32 %v442, 1.442695
    %v487 = vpow.pop %v486
    %v488 = vmul.f32 %v443, 1.442695
    %v489 = vpow.pop %v488
    %v490 = vmul.f32 %v444, 1.442695
    %v491 = vpow.pop %v490
    %v492 = vmul.f32 %v445, 1.442695
    %v493 = vpow.pop %v492
    %v494 = vmul.f32 %v446, 1.442695
    %v495 = vpow.pop %v494
    %v496 = vmul.f32 %v447, 1.442695
    %v497 = vpow.pop %v496
    %v498 = vmul.f32 %v448, 1.442695
    %v499 = vpow.pop %v498
    %v500 = vmul.f32 %v449, 1.442695
    %v501 = vpow.pop %v500
    %v502 = vmul.f32 %v450, 1.442695
    %v503 = vpow.pop %v502
    %v504 = vmul.f32 %v451, 1.442695
    %v505 = vpow.pop %v504
    %v506 = vmul.f32 %v452, 1.442695
    %v507 = vpow.pop %v506
    %v508 = vmul.f32 %v453, 1.442695
    %v509 = vpow.pop %v508
    %v510 = vmul.f32 %v454, 1.442695
    %v511 = vpow.pop %v510
    %v512 = vmul.f32 %v455, 1.442695
    %v513 = vpow.pop %v512
    %v514 = vmul.f32 %v456, 1.442695
    %v515 = vpow.pop %v514
    %v516 = vmul.f32 %v457, 1.442695
    %v517 = vpow.pop %v516
    %v518 = vmul.f32 %v458, 1.442695
    %v519 = vpow.pop %v518
    %v520 = vmul.f32 %v459, 1.442695
    %v521 = vpow.pop %v520
    %v522 = vmul.f32 %v460, 1.442695
    %v523 = vpow.pop %v522
    %v524 = vmul.f32 %v461, 1.442695
    %v525 = vpow.pop %v524
    %v526 = vadd.f32 %v463, 1.0
    %v527 = vadd.f32 %v465, 1.0
    %v528 = vadd.f32 %v467, 1.0
    %v529 = vadd.f32 %v469, 1.0
    %v530 = vadd.f32 %v471, 1.0
    %v531 = vadd.f32 %v473, 1.0
    %v532 = vadd.f32 %v475, 1.0
    %v533 = vadd.f32 %v477, 1.0
    %v534 = vadd.f32 %v479, 1.0
    %v535 = vadd.f32 %v481, 1.0
    %v536 = vadd.f32 %v483, 1.0
    %v537 = vadd.f32 %v485, 1.0
    %v538 = vadd.f32 %v487, 1.0
    %v539 = vadd.f32 %v489, 1.0
    %v540 = vadd.f32 %v491, 1.0
    %v541 = vadd.f32 %v493, 1.0
    %v542 = vadd.f32 %v495, 1.0
    %v543 = vadd.f32 %v497, 1.0
    %v544 = vadd.f32 %v499, 1.0
    %v545 = vadd.f32 %v501, 1.0
    %v546 = vadd.f32 %v503, 1.0
    %v547 = vadd.f32 %v505, 1.0
    %v548 = vadd.f32 %v507, 1.0
    %v549 = vadd.f32 %v509, 1.0
    %v550 = vadd.f32 %v511, 1.0
    %v551 = vadd.f32 %v513, 1.0
    %v552 = vadd.f32 %v515, 1.0
    %v553 = vadd.f32 %v517, 1.0
    %v554 = vadd.f32 %v519, 1.0
    %v555 = vadd.f32 %v521, 1.0
    %v556 = vadd.f32 %v523, 1.0
    %v557 = vadd.f32 %v525, 1.0
    %v558 = vrcp.pop %v526
    %v559 = vmul.f32 1.0, %v558
    %v560 = vrcp.pop %v527
    %v561 = vmul.f32 1.0, %v560
    %v562 = vrcp.pop %v528
    %v563 = vmul.f32 1.0, %v562
    %v564 = vrcp.pop %v529
    %v565 = vmul.f32 1.0, %v564
    %v566 = vrcp.pop %v530
    %v567 = vmul.f32 1.0, %v566
    %v568 = vrcp.pop %v531
    %v569 = vmul.f32 1.0, %v568
    %v570 = vrcp.pop %v532
    %v571 = vmul.f32 1.0, %v570
    %v572 = vrcp.pop %v533
    %v573 = vmul.f32 1.0, %v572
    %v574 = vrcp.pop %v534
    %v575 = vmul.f32 1.0, %v574
    %v576 = vrcp.pop %v535
    %v577 = vmul.f32 1.0, %v576
    %v578 = vrcp.pop %v536
    %v579 = vmul.f32 1.0, %v578
    %v580 = vrcp.pop %v537
    %v581 = vmul.f32 1.0, %v580
    %v582 = vrcp.pop %v538
    %v583 = vmul.f32 1.0, %v582
    %v584 = vrcp.pop %v539
    %v585 = vmul.f32 1.0, %v584
    %v586 = vrcp.pop %v540
    %v587 = vmul.f32 1.0, %v586
    %v588 = vrcp.pop %v541
    %v589 = vmul.f32 1.0, %v588
    %v590 = vrcp.pop %v542
    %v591 = vmul.f32 1.0, %v590
    %v592 = vrcp.pop %v543
    %v593 = vmul.f32 1.0, %v592
    %v594 = vrcp.pop %v544
    %v595 = vmul.f32 1.0, %v594
    %v596 = vrcp.pop %v545
    %v597 = vmul.f32 1.0, %v596
    %v598 = vrcp.pop %v546
    %v599 = vmul.f32 1.0, %v598
    %v600 = vrcp.pop %v547
    %v601 = vmul.f32 1.0, %v600
    %v602 = vrcp.pop %v548
    %v603 = vmul.f32 1.0, %v602
    %v604 = vrcp.pop %v549
    %v605 = vmul.f32 1.0, %v604
    %v606 = vrcp.pop %v550
    %v607 = vmul.f32 1.0, %v606
    %v608 = vrcp.pop %v551
    %v609 = vmul.f32 1.0, %v608
    %v610 = vrcp.pop %v552
    %v611 = vmul.f32 1.0, %v610
    %v612 = vrcp.pop %v553
    %v613 = vmul.f32 1.0, %v612
    %v614 = vrcp.pop %v554
    %v615 = vmul.f32 1.0, %v614
    %v616 = vrcp.pop %v555
    %v617 = vmul.f32 1.0, %v616
    %v618 = vrcp.pop %v556
    %v619 = vmul.f32 1.0, %v618
    %v620 = vrcp.pop %v557
    %v621 = vmul.f32 1.0, %v620
    %v622 = vmul.f32 %v352, %v559
    %v623 = vmul.f32 %v354, %v561
    %v624 = vmul.f32 %v356, %v563
    %v625 = vmul.f32 %v358, %v565
    %v626 = vmul.f32 %v362, %v567
    %v627 = vmul.f32 %v364, %v569
    %v628 = vmul.f32 %v366, %v571
    %v629 = vmul.f32 %v368, %v573
    %v630 = vmul.f32 %v372, %v575
    %v631 = vmul.f32 %v374, %v577
    %v632 = vmul.f32 %v376, %v579
    %v633 = vmul.f32 %v378, %v581
    %v634 = vmul.f32 %v382, %v583
    %v635 = vmul.f32 %v384, %v585
    %v636 = vmul.f32 %v386, %v587
    %v637 = vmul.f32 %v388, %v589
    %v638 = vmul.f32 %v392, %v591
    %v639 = vmul.f32 %v394, %v593
    %v640 = vmul.f32 %v396, %v595
    %v641 = vmul.f32 %v398, %v597
    %v642 = vmul.f32 %v402, %v599
    %v643 = vmul.f32 %v404, %v601
    %v644 = vmul.f32 %v406, %v603
    %v645 = vmul.f32 %v408, %v605
    %v646 = vmul.f32 %v412, %v607
    %v647 = vmul.f32 %v414, %v609
    %v648 = vmul.f32 %v416, %v611
    %v649 = vmul.f32 %v418, %v613
    %v650 = vmul.f32 %v422, %v615
    %v651 = vmul.f32 %v424, %v617
    %v652 = vmul.f32 %v426, %v619
    %v653 = vmul.f32 %v428, %v621
    %v654 = vpack.c.bf16 %v624, %v622
    %v655 = vpack.c.bf16 %v628, %v626
    %v656 = vpack.c.bf16 %v632, %v630
    %v657 = vpack.c.bf16 %v636, %v634
    %v658 = vpack.c.bf16 %v640, %v638
    %v659 = vpack.c.bf16 %v644, %v642
    %v660 = vpack.c.bf16 %v648, %v646
    %v661 = vpack.c.bf16 %v652, %v650
    %v662 = vld [vmem:[#allocation8] sm:$0xff]
    %v663 = vld [vmem:[#allocation8 + $0x8] sm:$0xff]
    %v664 = vld [vmem:[#allocation8 + $0x10] sm:$0xff]
    %v665 = vld [vmem:[#allocation8 + $0x18] sm:$0xff]
    %v666 = vld [vmem:[#allocation8 + $0x20] sm:$0xff]
    %v667 = vld [vmem:[#allocation8 + $0x28] sm:$0xff]
    %v668 = vld [vmem:[#allocation8 + $0x30] sm:$0xff]
    %v669 = vld [vmem:[#allocation8 + $0x38] sm:$0xff]
    %v670 = vld [vmem:[#allocation8 + $0x40] sm:$0xff]
    %v671 = vld [vmem:[#allocation8 + $0x48] sm:$0xff]
    %v672 = vld [vmem:[#allocation8 + $0x50] sm:$0xff]
    %v673 = vld [vmem:[#allocation8 + $0x58] sm:$0xff]
    %v674 = vld [vmem:[#allocation8 + $0x60] sm:$0xff]
    %v675 = vld [vmem:[#allocation8 + $0x68] sm:$0xff]
    %v676 = vld [vmem:[#allocation8 + $0x70] sm:$0xff]
    %v677 = vld [vmem:[#allocation8 + $0x78] sm:$0xff]
    %v694 = vunpack.c.l.b16 %v662
    %v695 = vunpack.c.h.b16 %v662
    %v696 = vunpack.c.l.b16 %v663
    %v697 = vunpack.c.h.b16 %v663
    %v698 = vunpack.c.l.b16 %v664
    %v699 = vunpack.c.h.b16 %v664
    %v700 = vunpack.c.l.b16 %v665
    %v701 = vunpack.c.h.b16 %v665
    %v702 = vunpack.c.l.b16 %v666
    %v703 = vunpack.c.h.b16 %v666
    %v704 = vunpack.c.l.b16 %v667
    %v705 = vunpack.c.h.b16 %v667
    %v706 = vunpack.c.l.b16 %v668
    %v707 = vunpack.c.h.b16 %v668
    %v708 = vunpack.c.l.b16 %v669
    %v709 = vunpack.c.h.b16 %v669
    %v710 = vunpack.c.l.b16 %v670
    %v711 = vunpack.c.h.b16 %v670
    %v712 = vunpack.c.l.b16 %v671
    %v713 = vunpack.c.h.b16 %v671
    %v714 = vunpack.c.l.b16 %v672
    %v715 = vunpack.c.h.b16 %v672
    %v716 = vunpack.c.l.b16 %v673
    %v717 = vunpack.c.h.b16 %v673
    %v718 = vunpack.c.l.b16 %v674
    %v719 = vunpack.c.h.b16 %v674
    %v720 = vunpack.c.l.b16 %v675
    %v721 = vunpack.c.h.b16 %v675
    %v722 = vunpack.c.l.b16 %v676
    %v723 = vunpack.c.h.b16 %v676
    %v724 = vunpack.c.l.b16 %v677
    %v725 = vunpack.c.h.b16 %v677
    %v726 = vpack.c.b16 %v696, %v694
    %v727 = vpack.c.b16 %v697, %v695
    %v728 = vpack.c.b16 %v700, %v698
    %v729 = vpack.c.b16 %v701, %v699
    %v730 = vpack.c.b16 %v704, %v702
    %v731 = vpack.c.b16 %v705, %v703
    %v732 = vpack.c.b16 %v708, %v706
    %v733 = vpack.c.b16 %v709, %v707
    %v734 = vpack.c.b16 %v712, %v710
    %v735 = vpack.c.b16 %v713, %v711
    %v736 = vpack.c.b16 %v716, %v714
    %v737 = vpack.c.b16 %v717, %v715
    %v738 = vpack.c.b16 %v720, %v718
    %v739 = vpack.c.b16 %v721, %v719
    %v740 = vpack.c.b16 %v724, %v722
    %v741 = vpack.c.b16 %v725, %v723
    %758 = vmatprep.subr.bf16.mxu0 %v741
    %759 = vmatpush1.bf16.msra.mxu0 %v740
    %760 = vmatprep.subr.bf16.mxu0 %v739
    %761 = vmatpush1.bf16.msra.mxu0 %v738
    %762 = vmatprep.subr.bf16.mxu0 %v737
    %763 = vmatpush1.bf16.msra.mxu0 %v736
    %764 = vmatprep.subr.bf16.mxu0 %v735
    %765 = vmatpush1.bf16.msra.mxu0 %v734
    %766 = vmatprep.subr.bf16.mxu0 %v733
    %767 = vmatpush1.bf16.msra.mxu0 %v732
    %768 = vmatprep.subr.bf16.mxu0 %v731
    %769 = vmatpush1.bf16.msra.mxu0 %v730
    %770 = vmatprep.subr.bf16.mxu0 %v729
    %771 = vmatpush1.bf16.msra.mxu0 %v728
    %772 = vmatprep.subr.bf16.mxu0 %v727
    %773 = vmatpush1.bf16.msra.mxu0 %v726
    %774 = vmatprep.subr.bf16.mxu0 0
    %775 = vmatpush2.bf16.msra.mxu0 0
    %776 = vmatprep.subr.bf16.mxu0 0
    %777 = vmatpush2.bf16.msra.mxu0 0
    %778 = vmatprep.subr.bf16.mxu0 0
    %779 = vmatpush2.bf16.msra.mxu0 0
    %780 = vmatprep.subr.bf16.mxu0 0
    %781 = vmatpush2.bf16.msra.mxu0 0
    %782 = vmatprep.subr.bf16.mxu0 0
    %783 = vmatpush2.bf16.msra.mxu0 0
    %784 = vmatprep.subr.bf16.mxu0 0
    %785 = vmatpush2.bf16.msra.mxu0 0
    %786 = vmatprep.subr.bf16.mxu0 0
    %787 = vmatpush2.bf16.msra.mxu0 0
    %788 = vmatprep.subr.bf16.mxu0 0
    %789 = vmatpush2.bf16.msra.mxu0 0
    %790 = vmatprep.mubr.bf16.mxu0 0
    %791 = vmatmul.mubr.bf16.gmra.mxu0 %v654
    %v792 = vpop.f32.mrf.mxu0
    %v793 = vadd.f32 0.0, %v792
    %v794 = vpop.f32.mrf.mxu0
    %v795 = vadd.f32 0.0, %v794
    %v796 = vpop.f32.mrf.mxu0
    %v797 = vadd.f32 0.0, %v796
    %v798 = vpop.f32.mrf.mxu0
    %v799 = vadd.f32 0.0, %v798
    %800 = vmatprep.mubr.bf16.mxu0 0
    %801 = vmatmul.mubr.bf16.gmra.mxu0 %v655
    %v802 = vpop.f32.mrf.mxu0
    %v803 = vadd.f32 0.0, %v802
    %v804 = vpop.f32.mrf.mxu0
    %v805 = vadd.f32 0.0, %v804
    %v806 = vpop.f32.mrf.mxu0
    %v807 = vadd.f32 0.0, %v806
    %v808 = vpop.f32.mrf.mxu0
    %v809 = vadd.f32 0.0, %v808
    %810 = vmatprep.mubr.bf16.mxu0 0
    %811 = vmatmul.mubr.bf16.gmra.mxu0 %v656
    %v812 = vpop.f32.mrf.mxu0
    %v813 = vadd.f32 0.0, %v812
    %v814 = vpop.f32.mrf.mxu0
    %v815 = vadd.f32 0.0, %v814
    %v816 = vpop.f32.mrf.mxu0
    %v817 = vadd.f32 0.0, %v816
    %v818 = vpop.f32.mrf.mxu0
    %v819 = vadd.f32 0.0, %v818
    %820 = vmatprep.mubr.bf16.mxu0 0
    %821 = vmatmul.mubr.bf16.gmra.mxu0 %v657
    %v822 = vpop.f32.mrf.mxu0
    %v823 = vadd.f32 0.0, %v822
    %v824 = vpop.f32.mrf.mxu0
    %v825 = vadd.f32 0.0, %v824
    %v826 = vpop.f32.mrf.mxu0
    %v827 = vadd.f32 0.0, %v826
    %v828 = vpop.f32.mrf.mxu0
    %v829 = vadd.f32 0.0, %v828
    %830 = vmatprep.mubr.bf16.mxu0 0
    %831 = vmatmul.mubr.bf16.gmra.mxu0 %v658
    %v832 = vpop.f32.mrf.mxu0
    %v833 = vadd.f32 0.0, %v832
    %v834 = vpop.f32.mrf.mxu0
    %v835 = vadd.f32 0.0, %v834
    %v836 = vpop.f32.mrf.mxu0
    %v837 = vadd.f32 0.0, %v836
    %v838 = vpop.f32.mrf.mxu0
    %v839 = vadd.f32 0.0, %v838
    %840 = vmatprep.mubr.bf16.mxu0 0
    %841 = vmatmul.mubr.bf16.gmra.mxu0 %v659
    %v842 = vpop.f32.mrf.mxu0
    %v843 = vadd.f32 0.0, %v842
    %v844 = vpop.f32.mrf.mxu0
    %v845 = vadd.f32 0.0, %v844
    %v846 = vpop.f32.mrf.mxu0
    %v847 = vadd.f32 0.0, %v846
    %v848 = vpop.f32.mrf.mxu0
    %v849 = vadd.f32 0.0, %v848
    %850 = vmatprep.mubr.bf16.mxu0 0
    %851 = vmatmul.mubr.bf16.gmra.mxu0 %v660
    %v852 = vpop.f32.mrf.mxu0
    %v853 = vadd.f32 0.0, %v852
    %v854 = vpop.f32.mrf.mxu0
    %v855 = vadd.f32 0.0, %v854
    %v856 = vpop.f32.mrf.mxu0
    %v857 = vadd.f32 0.0, %v856
    %v858 = vpop.f32.mrf.mxu0
    %v859 = vadd.f32 0.0, %v858
    %860 = vmatprep.mubr.bf16.mxu0 0
    %861 = vmatmul.mubr.bf16.gmra.mxu0 %v661
    %v862 = vpop.f32.mrf.mxu0
    %v863 = vadd.f32 0.0, %v862
    %v864 = vpop.f32.mrf.mxu0
    %v865 = vadd.f32 0.0, %v864
    %v866 = vpop.f32.mrf.mxu0
    %v867 = vadd.f32 0.0, %v866
    %v868 = vpop.f32.mrf.mxu0
    %v869 = vadd.f32 0.0, %v868
    %870 = vdwg.mxu0
    %v871 = vpack.c.bf16 %v797, %v793
    %v872 = vpack.c.bf16 %v807, %v803
    %v873 = vpack.c.bf16 %v817, %v813
    %v874 = vpack.c.bf16 %v827, %v823
    %v875 = vpack.c.bf16 %v837, %v833
    %v876 = vpack.c.bf16 %v847, %v843
    %v877 = vpack.c.bf16 %v857, %v853
    %v878 = vpack.c.bf16 %v867, %v863
    %v879 = vld [vmem:[#allocation10] sm:$0xf]
    %v880 = vld [vmem:[#allocation10 + $0x4] sm:$0xf]
    %v881 = vld [vmem:[#allocation10 + $0x8] sm:$0xf]
    %v882 = vld [vmem:[#allocation10 + $0xc] sm:$0xf]
    %v883 = vld [vmem:[#allocation10 + $0x10] sm:$0xf]
    %v884 = vld [vmem:[#allocation10 + $0x14] sm:$0xf]
    %v885 = vld [vmem:[#allocation10 + $0x18] sm:$0xf]
    %v886 = vld [vmem:[#allocation10 + $0x1c] sm:$0xf]
    %v887 = vld [vmem:[#allocation10 + $0x20] sm:$0xf]
    %v888 = vld [vmem:[#allocation10 + $0x24] sm:$0xf]
    %v889 = vld [vmem:[#allocation10 + $0x28] sm:$0xf]
    %v890 = vld [vmem:[#allocation10 + $0x2c] sm:$0xf]
    %v891 = vld [vmem:[#allocation10 + $0x30] sm:$0xf]
    %v892 = vld [vmem:[#allocation10 + $0x34] sm:$0xf]
    %v893 = vld [vmem:[#allocation10 + $0x38] sm:$0xf]
    %v894 = vld [vmem:[#allocation10 + $0x3c] sm:$0xf]
    %v911 = vunpack.c.l.b16 %v145
    %v912 = vunpack.c.l.b16 %v146
    %v913 = vunpack.c.l.b16 %v147
    %v914 = vunpack.c.l.b16 %v148
    %v915 = vunpack.c.l.b16 %v149
    %v916 = vunpack.c.l.b16 %v150
    %v917 = vunpack.c.l.b16 %v151
    %v918 = vunpack.c.l.b16 %v152
    %v919 = vunpack.c.l.b16 %v153
    %v920 = vunpack.c.l.b16 %v154
    %v921 = vunpack.c.l.b16 %v155
    %v922 = vunpack.c.l.b16 %v156
    %v923 = vunpack.c.l.b16 %v157
    %v924 = vunpack.c.l.b16 %v158
    %v925 = vunpack.c.l.b16 %v159
    %v926 = vunpack.c.l.b16 %v160
    %v927 = vpack.c.b16 %v912, %v911
    %v928 = vpack.c.b16 %v914, %v913
    %v929 = vpack.c.b16 %v916, %v915
    %v930 = vpack.c.b16 %v918, %v917
    %v931 = vpack.c.b16 %v920, %v919
    %v932 = vpack.c.b16 %v922, %v921
    %v933 = vpack.c.b16 %v924, %v923
    %v934 = vpack.c.b16 %v926, %v925
    %v959 = vunpack.c.l.b16 %v879
    %v960 = vunpack.c.l.b16 %v880
    %v961 = vunpack.c.l.b16 %v881
    %v962 = vunpack.c.l.b16 %v882
    %v963 = vunpack.c.l.b16 %v883
    %v964 = vunpack.c.l.b16 %v884
    %v965 = vunpack.c.l.b16 %v885
    %v966 = vunpack.c.l.b16 %v886
    %v967 = vunpack.c.l.b16 %v887
    %v968 = vunpack.c.l.b16 %v888
    %v969 = vunpack.c.l.b16 %v889
    %v970 = vunpack.c.l.b16 %v890
    %v971 = vunpack.c.l.b16 %v891
    %v972 = vunpack.c.l.b16 %v892
    %v973 = vunpack.c.l.b16 %v893
    %v974 = vunpack.c.l.b16 %v894
    %v975 = vpack.c.b16 %v960, %v959
    %v976 = vpack.c.b16 %v962, %v961
    %v977 = vpack.c.b16 %v964, %v963
    %v978 = vpack.c.b16 %v966, %v965
    %v979 = vpack.c.b16 %v968, %v967
    %v980 = vpack.c.b16 %v970, %v969
    %v981 = vpack.c.b16 %v972, %v971
    %v982 = vpack.c.b16 %v974, %v973
    %991 = vmatprep.subr.bf16.mxu0 0
    %992 = vmatpush1.bf16.msra.mxu0 %v982
    %993 = vmatprep.subr.bf16.mxu0 0
    %994 = vmatpush1.bf16.msra.mxu0 %v981
    %995 = vmatprep.subr.bf16.mxu0 0
    %996 = vmatpush1.bf16.msra.mxu0 %v980
    %997 = vmatprep.subr.bf16.mxu0 0
    %998 = vmatpush1.bf16.msra.mxu0 %v979
    %999 = vmatprep.subr.bf16.mxu0 0
    %1000 = vmatpush1.bf16.msra.mxu0 %v978
    %1001 = vmatprep.subr.bf16.mxu0 0
    %1002 = vmatpush1.bf16.msra.mxu0 %v977
    %1003 = vmatprep.subr.bf16.mxu0 0
    %1004 = vmatpush1.bf16.msra.mxu0 %v976
    %1005 = vmatprep.subr.bf16.mxu0 0
    %1006 = vmatpush1.bf16.msra.mxu0 %v975
    %1007 = vmatprep.subr.bf16.mxu0 0
    %1008 = vmatpush2.bf16.msra.mxu0 0
    %1009 = vmatprep.subr.bf16.mxu0 0
    %1010 = vmatpush2.bf16.msra.mxu0 0
    %1011 = vmatprep.subr.bf16.mxu0 0
    %1012 = vmatpush2.bf16.msra.mxu0 0
    %1013 = vmatprep.subr.bf16.mxu0 0
    %1014 = vmatpush2.bf16.msra.mxu0 0
    %1015 = vmatprep.subr.bf16.mxu0 0
    %1016 = vmatpush2.bf16.msra.mxu0 0
    %1017 = vmatprep.subr.bf16.mxu0 0
    %1018 = vmatpush2.bf16.msra.mxu0 0
    %1019 = vmatprep.subr.bf16.mxu0 0
    %1020 = vmatpush2.bf16.msra.mxu0 0
    %1021 = vmatprep.subr.bf16.mxu0 0
    %1022 = vmatpush2.bf16.msra.mxu0 0
    %1023 = vmatprep.mubr.bf16.mxu0 0
    %1024 = vmatmul.mubr.bf16.gmra.mxu0 %v927
    %v1025 = vpop.f32.mrf.mxu0
    %v1026 = vadd.f32 0.0, %v1025
    %v1027 = vpop.f32.mrf.mxu0
    %v1028 = vpop.f32.mrf.mxu0
    %v1029 = vadd.f32 0.0, %v1028
    %v1030 = vpop.f32.mrf.mxu0
    %1031 = vmatprep.mubr.bf16.mxu0 0
    %1032 = vmatmul.mubr.bf16.gmra.mxu0 %v928
    %v1033 = vpop.f32.mrf.mxu0
    %v1034 = vadd.f32 0.0, %v1033
    %v1035 = vpop.f32.mrf.mxu0
    %v1036 = vpop.f32.mrf.mxu0
    %v1037 = vadd.f32 0.0, %v1036
    %v1038 = vpop.f32.mrf.mxu0
    %1039 = vmatprep.mubr.bf16.mxu0 0
    %1040 = vmatmul.mubr.bf16.gmra.mxu0 %v929
    %v1041 = vpop.f32.mrf.mxu0
    %v1042 = vadd.f32 0.0, %v1041
    %v1043 = vpop.f32.mrf.mxu0
    %v1044 = vpop.f32.mrf.mxu0
    %v1045 = vadd.f32 0.0, %v1044
    %v1046 = vpop.f32.mrf.mxu0
    %1047 = vmatprep.mubr.bf16.mxu0 0
    %1048 = vmatmul.mubr.bf16.gmra.mxu0 %v930
    %v1049 = vpop.f32.mrf.mxu0
    %v1050 = vadd.f32 0.0, %v1049
    %v1051 = vpop.f32.mrf.mxu0
    %v1052 = vpop.f32.mrf.mxu0
    %v1053 = vadd.f32 0.0, %v1052
    %v1054 = vpop.f32.mrf.mxu0
    %1055 = vmatprep.mubr.bf16.mxu0 0
    %1056 = vmatmul.mubr.bf16.gmra.mxu0 %v931
    %v1057 = vpop.f32.mrf.mxu0
    %v1058 = vadd.f32 0.0, %v1057
    %v1059 = vpop.f32.mrf.mxu0
    %v1060 = vpop.f32.mrf.mxu0
    %v1061 = vadd.f32 0.0, %v1060
    %v1062 = vpop.f32.mrf.mxu0
    %1063 = vmatprep.mubr.bf16.mxu0 0
    %1064 = vmatmul.mubr.bf16.gmra.mxu0 %v932
    %v1065 = vpop.f32.mrf.mxu0
    %v1066 = vadd.f32 0.0, %v1065
    %v1067 = vpop.f32.mrf.mxu0
    %v1068 = vpop.f32.mrf.mxu0
    %v1069 = vadd.f32 0.0, %v1068
    %v1070 = vpop.f32.mrf.mxu0
    %1071 = vmatprep.mubr.bf16.mxu0 0
    %1072 = vmatmul.mubr.bf16.gmra.mxu0 %v933
    %v1073 = vpop.f32.mrf.mxu0
    %v1074 = vadd.f32 0.0, %v1073
    %v1075 = vpop.f32.mrf.mxu0
    %v1076 = vpop.f32.mrf.mxu0
    %v1077 = vadd.f32 0.0, %v1076
    %v1078 = vpop.f32.mrf.mxu0
    %1079 = vmatprep.mubr.bf16.mxu0 0
    %1080 = vmatmul.mubr.bf16.gmra.mxu0 %v934
    %v1081 = vpop.f32.mrf.mxu0
    %v1082 = vadd.f32 0.0, %v1081
    %v1083 = vpop.f32.mrf.mxu0
    %v1084 = vpop.f32.mrf.mxu0
    %v1085 = vadd.f32 0.0, %v1084
    %v1086 = vpop.f32.mrf.mxu0
    %1087 = vdwg.mxu0
    %v1088 = vadd.f32 %v795, %v1026
    %v1089 = vadd.f32 %v799, %v1029
    %v1090 = vadd.f32 %v805, %v1034
    %v1091 = vadd.f32 %v809, %v1037
    %v1092 = vadd.f32 %v815, %v1042
    %v1093 = vadd.f32 %v819, %v1045
    %v1094 = vadd.f32 %v825, %v1050
    %v1095 = vadd.f32 %v829, %v1053
    %v1096 = vadd.f32 %v835, %v1058
    %v1097 = vadd.f32 %v839, %v1061
    %v1098 = vadd.f32 %v845, %v1066
    %v1099 = vadd.f32 %v849, %v1069
    %v1100 = vadd.f32 %v855, %v1074
    %v1101 = vadd.f32 %v859, %v1077
    %v1102 = vadd.f32 %v865, %v1082
    %v1103 = vadd.f32 %v869, %v1085
    %v1104 = vpack.c.bf16 %v1089, %v1088
    %v1105 = vpack.c.bf16 %v1091, %v1090
    %v1106 = vpack.c.bf16 %v1093, %v1092
    %v1107 = vpack.c.bf16 %v1095, %v1094
    %v1108 = vpack.c.bf16 %v1097, %v1096
    %v1109 = vpack.c.bf16 %v1099, %v1098
    %v1110 = vpack.c.bf16 %v1101, %v1100
    %v1111 = vpack.c.bf16 %v1103, %v1102
    %v1112 = vld [vmem:[#allocation11] sm:$0xf]
    %v1113 = vld [vmem:[#allocation11 + $0x4] sm:$0xf]
    %v1114 = vld [vmem:[#allocation11 + $0x8] sm:$0xf]
    %v1115 = vld [vmem:[#allocation11 + $0xc] sm:$0xf]
    %v1116 = vld [vmem:[#allocation11 + $0x10] sm:$0xf]
    %v1117 = vld [vmem:[#allocation11 + $0x14] sm:$0xf]
    %v1118 = vld [vmem:[#allocation11 + $0x18] sm:$0xf]
    %v1119 = vld [vmem:[#allocation11 + $0x1c] sm:$0xf]
    %v1120 = vld [vmem:[#allocation11 + $0x20] sm:$0xf]
    %v1121 = vld [vmem:[#allocation11 + $0x24] sm:$0xf]
    %v1122 = vld [vmem:[#allocation11 + $0x28] sm:$0xf]
    %v1123 = vld [vmem:[#allocation11 + $0x2c] sm:$0xf]
    %v1124 = vld [vmem:[#allocation11 + $0x30] sm:$0xf]
    %v1125 = vld [vmem:[#allocation11 + $0x34] sm:$0xf]
    %v1126 = vld [vmem:[#allocation11 + $0x38] sm:$0xf]
    %v1127 = vld [vmem:[#allocation11 + $0x3c] sm:$0xf]
    %v1144 = vunpack.c.l.b16 %v1112
    %v1145 = vunpack.c.l.b16 %v1113
    %v1146 = vunpack.c.l.b16 %v1114
    %v1147 = vunpack.c.l.b16 %v1115
    %v1148 = vunpack.c.l.b16 %v1116
    %v1149 = vunpack.c.l.b16 %v1117
    %v1150 = vunpack.c.l.b16 %v1118
    %v1151 = vunpack.c.l.b16 %v1119
    %v1152 = vunpack.c.l.b16 %v1120
    %v1153 = vunpack.c.l.b16 %v1121
    %v1154 = vunpack.c.l.b16 %v1122
    %v1155 = vunpack.c.l.b16 %v1123
    %v1156 = vunpack.c.l.b16 %v1124
    %v1157 = vunpack.c.l.b16 %v1125
    %v1158 = vunpack.c.l.b16 %v1126
    %v1159 = vunpack.c.l.b16 %v1127
    %v1160 = vpack.c.b16 %v1145, %v1144
    %v1161 = vpack.c.b16 %v1147, %v1146
    %v1162 = vpack.c.b16 %v1149, %v1148
    %v1163 = vpack.c.b16 %v1151, %v1150
    %v1164 = vpack.c.b16 %v1153, %v1152
    %v1165 = vpack.c.b16 %v1155, %v1154
    %v1166 = vpack.c.b16 %v1157, %v1156
    %v1167 = vpack.c.b16 %v1159, %v1158
    %1176 = vmatprep.subr.bf16.mxu0 0
    %1177 = vmatpush1.bf16.msra.mxu0 %v1167
    %1178 = vmatprep.subr.bf16.mxu0 0
    %1179 = vmatpush1.bf16.msra.mxu0 %v1166
    %1180 = vmatprep.subr.bf16.mxu0 0
    %1181 = vmatpush1.bf16.msra.mxu0 %v1165
    %1182 = vmatprep.subr.bf16.mxu0 0
    %1183 = vmatpush1.bf16.msra.mxu0 %v1164
    %1184 = vmatprep.subr.bf16.mxu0 0
    %1185 = vmatpush1.bf16.msra.mxu0 %v1163
    %1186 = vmatprep.subr.bf16.mxu0 0
    %1187 = vmatpush1.bf16.msra.mxu0 %v1162
    %1188 = vmatprep.subr.bf16.mxu0 0
    %1189 = vmatpush1.bf16.msra.mxu0 %v1161
    %1190 = vmatprep.subr.bf16.mxu0 0
    %1191 = vmatpush1.bf16.msra.mxu0 %v1160
    %1192 = vmatprep.subr.bf16.mxu0 0
    %1193 = vmatpush2.bf16.msra.mxu0 0
    %1194 = vmatprep.subr.bf16.mxu0 0
    %1195 = vmatpush2.bf16.msra.mxu0 0
    %1196 = vmatprep.subr.bf16.mxu0 0
    %1197 = vmatpush2.bf16.msra.mxu0 0
    %1198 = vmatprep.subr.bf16.mxu0 0
    %1199 = vmatpush2.bf16.msra.mxu0 0
    %1200 = vmatprep.subr.bf16.mxu0 0
    %1201 = vmatpush2.bf16.msra.mxu0 0
    %1202 = vmatprep.subr.bf16.mxu0 0
    %1203 = vmatpush2.bf16.msra.mxu0 0
    %1204 = vmatprep.subr.bf16.mxu0 0
    %1205 = vmatpush2.bf16.msra.mxu0 0
    %1206 = vmatprep.subr.bf16.mxu0 0
    %1207 = vmatpush2.bf16.msra.mxu0 0
    %1208 = vmatprep.mubr.bf16.mxu0 0
    %1209 = vmatmul.mubr.bf16.gmra.mxu0 %v871
    %v1210 = vpop.f32.mrf.mxu0
    %v1211 = vadd.f32 0.0, %v1210
    %v1212 = vpop.f32.mrf.mxu0
    %v1213 = vpop.f32.mrf.mxu0
    %v1214 = vadd.f32 0.0, %v1213
    %v1215 = vpop.f32.mrf.mxu0
    %1216 = vmatprep.mubr.bf16.mxu0 0
    %1217 = vmatmul.mubr.bf16.gmra.mxu0 %v872
    %v1218 = vpop.f32.mrf.mxu0
    %v1219 = vadd.f32 0.0, %v1218
    %v1220 = vpop.f32.mrf.mxu0
    %v1221 = vpop.f32.mrf.mxu0
    %v1222 = vadd.f32 0.0, %v1221
    %v1223 = vpop.f32.mrf.mxu0
    %1224 = vmatprep.mubr.bf16.mxu0 0
    %1225 = vmatmul.mubr.bf16.gmra.mxu0 %v873
    %v1226 = vpop.f32.mrf.mxu0
    %v1227 = vadd.f32 0.0, %v1226
    %v1228 = vpop.f32.mrf.mxu0
    %v1229 = vpop.f32.mrf.mxu0
    %v1230 = vadd.f32 0.0, %v1229
    %v1231 = vpop.f32.mrf.mxu0
    %1232 = vmatprep.mubr.bf16.mxu0 0
    %1233 = vmatmul.mubr.bf16.gmra.mxu0 %v874
    %v1234 = vpop.f32.mrf.mxu0
    %v1235 = vadd.f32 0.0, %v1234
    %v1236 = vpop.f32.mrf.mxu0
    %v1237 = vpop.f32.mrf.mxu0
    %v1238 = vadd.f32 0.0, %v1237
    %v1239 = vpop.f32.mrf.mxu0
    %1240 = vmatprep.mubr.bf16.mxu0 0
    %1241 = vmatmul.mubr.bf16.gmra.mxu0 %v875
    %v1242 = vpop.f32.mrf.mxu0
    %v1243 = vadd.f32 0.0, %v1242
    %v1244 = vpop.f32.mrf.mxu0
    %v1245 = vpop.f32.mrf.mxu0
    %v1246 = vadd.f32 0.0, %v1245
    %v1247 = vpop.f32.mrf.mxu0
    %1248 = vmatprep.mubr.bf16.mxu0 0
    %1249 = vmatmul.mubr.bf16.gmra.mxu0 %v876
    %v1250 = vpop.f32.mrf.mxu0
    %v1251 = vadd.f32 0.0, %v1250
    %v1252 = vpop.f32.mrf.mxu0
    %v1253 = vpop.f32.mrf.mxu0
    %v1254 = vadd.f32 0.0, %v1253
    %v1255 = vpop.f32.mrf.mxu0
    %1256 = vmatprep.mubr.bf16.mxu0 0
    %1257 = vmatmul.mubr.bf16.gmra.mxu0 %v877
    %v1258 = vpop.f32.mrf.mxu0
    %v1259 = vadd.f32 0.0, %v1258
    %v1260 = vpop.f32.mrf.mxu0
    %v1261 = vpop.f32.mrf.mxu0
    %v1262 = vadd.f32 0.0, %v1261
    %v1263 = vpop.f32.mrf.mxu0
    %1264 = vmatprep.mubr.bf16.mxu0 0
    %1265 = vmatmul.mubr.bf16.gmra.mxu0 %v878
    %v1266 = vpop.f32.mrf.mxu0
    %v1267 = vadd.f32 0.0, %v1266
    %v1268 = vpop.f32.mrf.mxu0
    %v1269 = vpop.f32.mrf.mxu0
    %v1270 = vadd.f32 0.0, %v1269
    %v1271 = vpop.f32.mrf.mxu0
    %1272 = vdwg.mxu0
    %v1273 = vld [vmem:[#allocation13] sm:$0xf]
    %v1274 = vld [vmem:[#allocation13 + $0x4] sm:$0xf]
    %v1275 = vld [vmem:[#allocation13 + $0x8] sm:$0xf]
    %v1276 = vld [vmem:[#allocation13 + $0xc] sm:$0xf]
    %v1277 = vld [vmem:[#allocation13 + $0x10] sm:$0xf]
    %v1278 = vld [vmem:[#allocation13 + $0x14] sm:$0xf]
    %v1279 = vld [vmem:[#allocation13 + $0x18] sm:$0xf]
    %v1280 = vld [vmem:[#allocation13 + $0x1c] sm:$0xf]
    %v1281 = vld [vmem:[#allocation13 + $0x20] sm:$0xf]
    %v1282 = vld [vmem:[#allocation13 + $0x24] sm:$0xf]
    %v1283 = vld [vmem:[#allocation13 + $0x28] sm:$0xf]
    %v1284 = vld [vmem:[#allocation13 + $0x2c] sm:$0xf]
    %v1285 = vld [vmem:[#allocation13 + $0x30] sm:$0xf]
    %v1286 = vld [vmem:[#allocation13 + $0x34] sm:$0xf]
    %v1287 = vld [vmem:[#allocation13 + $0x38] sm:$0xf]
    %v1288 = vld [vmem:[#allocation13 + $0x3c] sm:$0xf]
    %v1305 = vunpack.c.l.b16 %v1273
    %v1306 = vunpack.c.l.b16 %v1274
    %v1307 = vunpack.c.l.b16 %v1275
    %v1308 = vunpack.c.l.b16 %v1276
    %v1309 = vunpack.c.l.b16 %v1277
    %v1310 = vunpack.c.l.b16 %v1278
    %v1311 = vunpack.c.l.b16 %v1279
    %v1312 = vunpack.c.l.b16 %v1280
    %v1313 = vunpack.c.l.b16 %v1281
    %v1314 = vunpack.c.l.b16 %v1282
    %v1315 = vunpack.c.l.b16 %v1283
    %v1316 = vunpack.c.l.b16 %v1284
    %v1317 = vunpack.c.l.b16 %v1285
    %v1318 = vunpack.c.l.b16 %v1286
    %v1319 = vunpack.c.l.b16 %v1287
    %v1320 = vunpack.c.l.b16 %v1288
    %v1321 = vpack.c.b16 %v1306, %v1305
    %v1322 = vpack.c.b16 %v1308, %v1307
    %v1323 = vpack.c.b16 %v1310, %v1309
    %v1324 = vpack.c.b16 %v1312, %v1311
    %v1325 = vpack.c.b16 %v1314, %v1313
    %v1326 = vpack.c.b16 %v1316, %v1315
    %v1327 = vpack.c.b16 %v1318, %v1317
    %v1328 = vpack.c.b16 %v1320, %v1319
    %1337 = vmatprep.subr.bf16.mxu0 0
    %1338 = vmatpush1.bf16.msra.mxu0 %v1328
    %1339 = vmatprep.subr.bf16.mxu0 0
    %1340 = vmatpush1.bf16.msra.mxu0 %v1327
    %1341 = vmatprep.subr.bf16.mxu0 0
    %1342 = vmatpush1.bf16.msra.mxu0 %v1326
    %1343 = vmatprep.subr.bf16.mxu0 0
    %1344 = vmatpush1.bf16.msra.mxu0 %v1325
    %1345 = vmatprep.subr.bf16.mxu0 0
    %1346 = vmatpush1.bf16.msra.mxu0 %v1324
    %1347 = vmatprep.subr.bf16.mxu0 0
    %1348 = vmatpush1.bf16.msra.mxu0 %v1323
    %1349 = vmatprep.subr.bf16.mxu0 0
    %1350 = vmatpush1.bf16.msra.mxu0 %v1322
    %1351 = vmatprep.subr.bf16.mxu0 0
    %1352 = vmatpush1.bf16.msra.mxu0 %v1321
    %1353 = vmatprep.subr.bf16.mxu0 0
    %1354 = vmatpush2.bf16.msra.mxu0 0
    %1355 = vmatprep.subr.bf16.mxu0 0
    %1356 = vmatpush2.bf16.msra.mxu0 0
    %1357 = vmatprep.subr.bf16.mxu0 0
    %1358 = vmatpush2.bf16.msra.mxu0 0
    %1359 = vmatprep.subr.bf16.mxu0 0
    %1360 = vmatpush2.bf16.msra.mxu0 0
    %1361 = vmatprep.subr.bf16.mxu0 0
    %1362 = vmatpush2.bf16.msra.mxu0 0
    %1363 = vmatprep.subr.bf16.mxu0 0
    %1364 = vmatpush2.bf16.msra.mxu0 0
    %1365 = vmatprep.subr.bf16.mxu0 0
    %1366 = vmatpush2.bf16.msra.mxu0 0
    %1367 = vmatprep.subr.bf16.mxu0 0
    %1368 = vmatpush2.bf16.msra.mxu0 0
    %1369 = vmatprep.mubr.bf16.mxu0 0
    %1370 = vmatmul.mubr.bf16.gmra.mxu0 %v1104
    %v1371 = vpop.f32.mrf.mxu0
    %v1372 = vadd.f32 0.0, %v1371
    %v1373 = vpop.f32.mrf.mxu0
    %v1374 = vpop.f32.mrf.mxu0
    %v1375 = vadd.f32 0.0, %v1374
    %v1376 = vpop.f32.mrf.mxu0
    %1377 = vmatprep.mubr.bf16.mxu0 0
    %1378 = vmatmul.mubr.bf16.gmra.mxu0 %v1105
    %v1379 = vpop.f32.mrf.mxu0
    %v1380 = vadd.f32 0.0, %v1379
    %v1381 = vpop.f32.mrf.mxu0
    %v1382 = vpop.f32.mrf.mxu0
    %v1383 = vadd.f32 0.0, %v1382
    %v1384 = vpop.f32.mrf.mxu0
    %1385 = vmatprep.mubr.bf16.mxu0 0
    %1386 = vmatmul.mubr.bf16.gmra.mxu0 %v1106
    %v1387 = vpop.f32.mrf.mxu0
    %v1388 = vadd.f32 0.0, %v1387
    %v1389 = vpop.f32.mrf.mxu0
    %v1390 = vpop.f32.mrf.mxu0
    %v1391 = vadd.f32 0.0, %v1390
    %v1392 = vpop.f32.mrf.mxu0
    %1393 = vmatprep.mubr.bf16.mxu0 0
    %1394 = vmatmul.mubr.bf16.gmra.mxu0 %v1107
    %v1395 = vpop.f32.mrf.mxu0
    %v1396 = vadd.f32 0.0, %v1395
    %v1397 = vpop.f32.mrf.mxu0
    %v1398 = vpop.f32.mrf.mxu0
    %v1399 = vadd.f32 0.0, %v1398
    %v1400 = vpop.f32.mrf.mxu0
    %1401 = vmatprep.mubr.bf16.mxu0 0
    %1402 = vmatmul.mubr.bf16.gmra.mxu0 %v1108
    %v1403 = vpop.f32.mrf.mxu0
    %v1404 = vadd.f32 0.0, %v1403
    %v1405 = vpop.f32.mrf.mxu0
    %v1406 = vpop.f32.mrf.mxu0
    %v1407 = vadd.f32 0.0, %v1406
    %v1408 = vpop.f32.mrf.mxu0
    %1409 = vmatprep.mubr.bf16.mxu0 0
    %1410 = vmatmul.mubr.bf16.gmra.mxu0 %v1109
    %v1411 = vpop.f32.mrf.mxu0
    %v1412 = vadd.f32 0.0, %v1411
    %v1413 = vpop.f32.mrf.mxu0
    %v1414 = vpop.f32.mrf.mxu0
    %v1415 = vadd.f32 0.0, %v1414
    %v1416 = vpop.f32.mrf.mxu0
    %1417 = vmatprep.mubr.bf16.mxu0 0
    %1418 = vmatmul.mubr.bf16.gmra.mxu0 %v1110
    %v1419 = vpop.f32.mrf.mxu0
    %v1420 = vadd.f32 0.0, %v1419
    %v1421 = vpop.f32.mrf.mxu0
    %v1422 = vpop.f32.mrf.mxu0
    %v1423 = vadd.f32 0.0, %v1422
    %v1424 = vpop.f32.mrf.mxu0
    %1425 = vmatprep.mubr.bf16.mxu0 0
    %1426 = vmatmul.mubr.bf16.gmra.mxu0 %v1111
    %v1427 = vpop.f32.mrf.mxu0
    %v1428 = vadd.f32 0.0, %v1427
    %v1429 = vpop.f32.mrf.mxu0
    %v1430 = vpop.f32.mrf.mxu0
    %v1431 = vadd.f32 0.0, %v1430
    %v1432 = vpop.f32.mrf.mxu0
    %1433 = vdwg.mxu0
    %v1434 = vpack.c.bf16 %v1214, %v1211
    %v1435 = vpack.c.bf16 %v1375, %v1372
    %v1436 = vpack.c.bf16 %v1222, %v1219
    %v1437 = vpack.c.bf16 %v1383, %v1380
    %v1438 = vpack.c.bf16 %v1230, %v1227
    %v1439 = vpack.c.bf16 %v1391, %v1388
    %v1440 = vpack.c.bf16 %v1238, %v1235
    %v1441 = vpack.c.bf16 %v1399, %v1396
    %v1442 = vpack.c.bf16 %v1246, %v1243
    %v1443 = vpack.c.bf16 %v1407, %v1404
    %v1444 = vpack.c.bf16 %v1254, %v1251
    %v1445 = vpack.c.bf16 %v1415, %v1412
    %v1446 = vpack.c.bf16 %v1262, %v1259
    %v1447 = vpack.c.bf16 %v1423, %v1420
    %v1448 = vpack.c.bf16 %v1270, %v1267
    %v1449 = vpack.c.bf16 %v1431, %v1428
    %v1466 = vunpack.c.l.b16 %v1434
    %v1467 = vunpack.c.l.b16 %v1435
    %v1468 = vunpack.c.h.b16 %v1434
    %v1469 = vunpack.c.h.b16 %v1435
    %v1470 = vunpack.c.l.b16 %v1436
    %v1471 = vunpack.c.l.b16 %v1437
    %v1472 = vunpack.c.h.b16 %v1436
    %v1473 = vunpack.c.h.b16 %v1437
    %v1474 = vunpack.c.l.b16 %v1438
    %v1475 = vunpack.c.l.b16 %v1439
    %v1476 = vunpack.c.h.b16 %v1438
    %v1477 = vunpack.c.h.b16 %v1439
    %v1478 = vunpack.c.l.b16 %v1440
    %v1479 = vunpack.c.l.b16 %v1441
    %v1480 = vunpack.c.h.b16 %v1440
    %v1481 = vunpack.c.h.b16 %v1441
    %v1482 = vunpack.c.l.b16 %v1442
    %v1483 = vunpack.c.l.b16 %v1443
    %v1484 = vunpack.c.h.b16 %v1442
    %v1485 = vunpack.c.h.b16 %v1443
    %v1486 = vunpack.c.l.b16 %v1444
    %v1487 = vunpack.c.l.b16 %v1445
    %v1488 = vunpack.c.h.b16 %v1444
    %v1489 = vunpack.c.h.b16 %v1445
    %v1490 = vunpack.c.l.b16 %v1446
    %v1491 = vunpack.c.l.b16 %v1447
    %v1492 = vunpack.c.h.b16 %v1446
    %v1493 = vunpack.c.h.b16 %v1447
    %v1494 = vunpack.c.l.b16 %v1448
    %v1495 = vunpack.c.l.b16 %v1449
    %v1496 = vunpack.c.h.b16 %v1448
    %v1497 = vunpack.c.h.b16 %v1449
    %v1498 = vpack.c.b16 %v1467, %v1466
    %v1499 = vpack.c.b16 %v1469, %v1468
    %v1500 = vpack.c.b16 %v1471, %v1470
    %v1501 = vpack.c.b16 %v1473, %v1472
    %v1502 = vpack.c.b16 %v1475, %v1474
    %v1503 = vpack.c.b16 %v1477, %v1476
    %v1504 = vpack.c.b16 %v1479, %v1478
    %v1505 = vpack.c.b16 %v1481, %v1480
    %v1506 = vpack.c.b16 %v1483, %v1482
    %v1507 = vpack.c.b16 %v1485, %v1484
    %v1508 = vpack.c.b16 %v1487, %v1486
    %v1509 = vpack.c.b16 %v1489, %v1488
    %v1510 = vpack.c.b16 %v1491, %v1490
    %v1511 = vpack.c.b16 %v1493, %v1492
    %v1512 = vpack.c.b16 %v1495, %v1494
    %v1513 = vpack.c.b16 %v1497, %v1496
    %1530 = vst [vmem:[#allocation14] sm:$0xff] %v1498
    %1531 = vst [vmem:[#allocation14 + $0x8] sm:$0xff] %v1499
    %1532 = vst [vmem:[#allocation14 + $0x10] sm:$0xff] %v1500
    %1533 = vst [vmem:[#allocation14 + $0x18] sm:$0xff] %v1501
    %1534 = vst [vmem:[#allocation14 + $0x20] sm:$0xff] %v1502
    %1535 = vst [vmem:[#allocation14 + $0x28] sm:$0xff] %v1503
    %1536 = vst [vmem:[#allocation14 + $0x30] sm:$0xff] %v1504
    %1537 = vst [vmem:[#allocation14 + $0x38] sm:$0xff] %v1505
    %1538 = vst [vmem:[#allocation14 + $0x40] sm:$0xff] %v1506
    %1539 = vst [vmem:[#allocation14 + $0x48] sm:$0xff] %v1507
    %1540 = vst [vmem:[#allocation14 + $0x50] sm:$0xff] %v1508
    %1541 = vst [vmem:[#allocation14 + $0x58] sm:$0xff] %v1509
    %1542 = vst [vmem:[#allocation14 + $0x60] sm:$0xff] %v1510
    %1543 = vst [vmem:[#allocation14 + $0x68] sm:$0xff] %v1511
    %1544 = vst [vmem:[#allocation14 + $0x70] sm:$0xff] %v1512
    %1545 = vst [vmem:[#allocation14 + $0x78] sm:$0xff] %v1513
    %v1546 = vpack.c.bf16 %v625, %v623
    %v1547 = vpack.c.bf16 %v629, %v627
    %v1548 = vpack.c.bf16 %v633, %v631
    %v1549 = vpack.c.bf16 %v637, %v635
    %v1550 = vpack.c.bf16 %v641, %v639
    %v1551 = vpack.c.bf16 %v645, %v643
    %v1552 = vpack.c.bf16 %v649, %v647
    %v1553 = vpack.c.bf16 %v653, %v651
    %v1562 = vunpack.c.l.b16 %v1546
    %v1563 = vunpack.c.h.b16 %v1546
    %v1564 = vunpack.c.l.b16 %v1547
    %v1565 = vunpack.c.h.b16 %v1547
    %v1566 = vunpack.c.l.b16 %v1548
    %v1567 = vunpack.c.h.b16 %v1548
    %v1568 = vunpack.c.l.b16 %v1549
    %v1569 = vunpack.c.h.b16 %v1549
    %v1570 = vunpack.c.l.b16 %v1550
    %v1571 = vunpack.c.h.b16 %v1550
    %v1572 = vunpack.c.l.b16 %v1551
    %v1573 = vunpack.c.h.b16 %v1551
    %v1574 = vunpack.c.l.b16 %v1552
    %v1575 = vunpack.c.h.b16 %v1552
    %v1576 = vunpack.c.l.b16 %v1553
    %v1577 = vunpack.c.h.b16 %v1553
    %v1578 = vpack.c.b16 %v1562, %v1562
    %v1579 = vpack.c.b16 %v1563, %v1563
    %v1580 = vpack.c.b16 %v1564, %v1564
    %v1581 = vpack.c.b16 %v1565, %v1565
    %v1582 = vpack.c.b16 %v1566, %v1566
    %v1583 = vpack.c.b16 %v1567, %v1567
    %v1584 = vpack.c.b16 %v1568, %v1568
    %v1585 = vpack.c.b16 %v1569, %v1569
    %v1586 = vpack.c.b16 %v1570, %v1570
    %v1587 = vpack.c.b16 %v1571, %v1571
    %v1588 = vpack.c.b16 %v1572, %v1572
    %v1589 = vpack.c.b16 %v1573, %v1573
    %v1590 = vpack.c.b16 %v1574, %v1574
    %v1591 = vpack.c.b16 %v1575, %v1575
    %v1592 = vpack.c.b16 %v1576, %v1576
    %v1593 = vpack.c.b16 %v1577, %v1577
    %1610 = vst [vmem:[#allocation15] sm:$0xf] %v1578
    %1611 = vst [vmem:[#allocation15 + $0x4] sm:$0xf] %v1579
    %1612 = vst [vmem:[#allocation15 + $0x8] sm:$0xf] %v1580
    %1613 = vst [vmem:[#allocation15 + $0xc] sm:$0xf] %v1581
    %1614 = vst [vmem:[#allocation15 + $0x10] sm:$0xf] %v1582
    %1615 = vst [vmem:[#allocation15 + $0x14] sm:$0xf] %v1583
    %1616 = vst [vmem:[#allocation15 + $0x18] sm:$0xf] %v1584
    %1617 = vst [vmem:[#allocation15 + $0x1c] sm:$0xf] %v1585
    %1618 = vst [vmem:[#allocation15 + $0x20] sm:$0xf] %v1586
    %1619 = vst [vmem:[#allocation15 + $0x24] sm:$0xf] %v1587
    %1620 = vst [vmem:[#allocation15 + $0x28] sm:$0xf] %v1588
    %1621 = vst [vmem:[#allocation15 + $0x2c] sm:$0xf] %v1589
    %1622 = vst [vmem:[#allocation15 + $0x30] sm:$0xf] %v1590
    %1623 = vst [vmem:[#allocation15 + $0x34] sm:$0xf] %v1591
    %1624 = vst [vmem:[#allocation15 + $0x38] sm:$0xf] %v1592
    %1625 = vst [vmem:[#allocation15 + $0x3c] sm:$0xf] %v1593
    // Predicated region
    $region62: #{tpu_custom_call.1} parent=1 // pred_check
      _
    $region63: #{tpu_custom_call.1} parent=1 // pred_check_branch
      %1627 = sbr.rel (0) target = $region65
    $region64: #{tpu_custom_call.1} parent=1 // pred_region
      %s1629 = ssub.s32 2048, 2048
      %1630 = vsyncadd [#allocation4], %s1629
      %s1631 = sshll.u32 [#allocation14], 4
      %s1632 = int_to_ptr.vmem [resolvable:$true] %s1631
      %1637 = dma.vmem_to_hbm [thread:$0]  %s1632, 2048, %s8, [#allocation4], 128, 128, 8
    $region65: #{tpu_custom_call.1} parent=1 // pred_fallthru
      _
    // Predicated region
    $region66: #{tpu_custom_call.1} parent=1 // pred_check
      _
    $region67: #{tpu_custom_call.1} parent=1 // pred_check_branch
      %1639 = sbr.rel (0) target = $region69
    $region68: #{tpu_custom_call.1} parent=1 // pred_region
      %s1641 = ssub.s32 1024, 1024
      %1642 = vsyncadd [#allocation16], %s1641
      %s1643 = sshll.u32 [#allocation15], 4
      %s1644 = int_to_ptr.vmem [resolvable:$true] %s1643
      %1649 = dma.vmem_to_hbm [thread:$0]  %s1644, 1024, %s9, [#allocation16], 64, 64, 4
    $region69: #{tpu_custom_call.1} parent=1 // pred_fallthru
      _
    // Predicated region
    $region70: #{tpu_custom_call.1} parent=1 // pred_check
      _
    $region71: #{tpu_custom_call.1} parent=1 // pred_check_branch
      %1651 = sbr.rel (0) target = $region73
    $region72: #{tpu_custom_call.1} parent=1 // pred_region
      %1652 = dma.done [#allocation4], 2048
    $region73: #{tpu_custom_call.1} parent=1 // pred_fallthru
      _
    // Predicated region
    $region74: #{tpu_custom_call.1} parent=1 // pred_check
      _
    $region75: #{tpu_custom_call.1} parent=1 // pred_check_branch
      %1654 = sbr.rel (0) target = $region77
    $region76: #{tpu_custom_call.1} parent=1 // pred_region
      %1655 = dma.done [#allocation16], 1024
    $region77: #{tpu_custom_call.1} parent=1 // pred_fallthru
      _
    %1656 = vsyncpa [#allocation3], 1
    %1657 = vsyncpa [#allocation6], 1
    %1658 = vsyncpa [#allocation9], 1
    %1659 = vsyncpa [#allocation12], 1
    %1660 = vsyncpa [#allocation4], 1
    %1661 = vsyncpa [#allocation16], 1

</llo_original>
